<compile_context>
chip_gen: v7x
topology: tpu7x:2x2x1
jax: 0.10.0
libtpu: 0.0.40
codegen_flags: <defaults>
</compile_context>

<pallas_src>
import functools

import jax
import jax.numpy as jnp
from jax import lax
from jax.experimental import pallas as pl
from jax.experimental.pallas import tpu as pltpu

H = 128          # LSTM hidden size
G4 = 4 * H       # gate pre-activation width


# ----------------------------------------------------------------------------
# Fused kernel: conv stack -> 2-layer LSTM -> dense head (one batch / grid step)
# ----------------------------------------------------------------------------
def _fused_kernel(x_ref,
                  wc1_ref, bc1_ref, wc2_ref, bc2_ref,
                  wc3_ref, bc3_ref, wc4_ref, bc4_ref,
                  wih1_ref, whh1_ref, bl1_ref,
                  wih2_ref, whh2_ref, bl2_ref,
                  wd1_ref, bd1_ref, wd2_ref, bd2_ref, wd3_ref, bd3_ref,
                  out_ref, gx_sc):
    T = x_ref.shape[1]
    x = x_ref[0]                                   # (T, F) float32

    # ---- 4x (Conv1d k=3, pad=1, stride=1 + ReLU), channels-last -------------
    # One dot per layer with K = 3*Cin on [x[t-1] | x[t] | x[t+1]].
    def conv_relu(inp, w_ref, b_ref):
        cin = inp.shape[-1]
        zrow = jnp.zeros((1, cin), inp.dtype)
        x_prev = jnp.concatenate([zrow, inp[:T - 1]], axis=0)   # x[t-1], zero @ t=0
        x_next = jnp.concatenate([inp[1:], zrow], axis=0)       # x[t+1], zero @ t=T-1
        xc = jnp.concatenate([x_prev, inp, x_next], axis=-1)    # (T, 3*Cin)
        y = (jnp.dot(xc.astype(jnp.bfloat16), w_ref[...],
                     preferred_element_type=jnp.float32)
             + b_ref[...])
        return jnp.maximum(y, 0.0)                               # (T, Cout) f32

    y = conv_relu(x, wc1_ref, bc1_ref)     # (T, 64)
    y = conv_relu(y, wc2_ref, bc2_ref)     # (T, 64)
    y = conv_relu(y, wc3_ref, bc3_ref)     # (T, 64)
    y = conv_relu(y, wc4_ref, bc4_ref)     # (T, 128)

    # ---- LSTM layer-1 input projection, hoisted out of the recurrence -------
    gx_sc[...] = (jnp.dot(y.astype(jnp.bfloat16), wih1_ref[...],
                          preferred_element_type=jnp.float32)
                  + bl1_ref[...])                                # (T, 4H) f32

    # ---- 2-layer LSTM: both layers fused into a single time loop ------------
    def gates(pre):                                # pre: (1, 4H), PyTorch order i,f,g,o
        i = jax.nn.sigmoid(pre[:, 0 * H:1 * H])
        f = jax.nn.sigmoid(pre[:, 1 * H:2 * H])
        g = jnp.tanh(pre[:, 2 * H:3 * H])
        o = jax.nn.sigmoid(pre[:, 3 * H:4 * H])
        return i, f, g, o

    zeros = jnp.zeros((1, H), jnp.float32)

    def step(t, carry):
        h1, c1, h2, c2 = carry
        # layer 1: x-projection precomputed; only h @ W_hh per step.
        pre1 = (gx_sc[pl.ds(t, 1), :]
                + jnp.dot(h1.astype(jnp.bfloat16), whh1_ref[...],
                          preferred_element_type=jnp.float32))
        i1, f1, g1, o1 = gates(pre1)
        c1 = f1 * c1 + i1 * g1
        h1 = o1 * jnp.tanh(c1)
        # layer 2 consumes h1_t immediately (no hidden-sequence scratch).
        pre2 = (jnp.dot(h1.astype(jnp.bfloat16), wih2_ref[...],
                        preferred_element_type=jnp.float32)
                + jnp.dot(h2.astype(jnp.bfloat16), whh2_ref[...],
                          preferred_element_type=jnp.float32)
                + bl2_ref[...])
        i2, f2, g2, o2 = gates(pre2)
        c2 = f2 * c2 + i2 * g2
        h2 = o2 * jnp.tanh(c2)
        return h1, c1, h2, c2

    _, _, h2, _ = lax.fori_loop(0, T, step, (zeros, zeros, zeros, zeros))

    # ---- dense head epilogue: 128 -> 64 -> 32 -> 1 -> sigmoid ----------------
    d = jnp.dot(h2.astype(jnp.bfloat16), wd1_ref[...],
                preferred_element_type=jnp.float32) + bd1_ref[...]
    d = jnp.dot(d.astype(jnp.bfloat16), wd2_ref[...],
                preferred_element_type=jnp.float32) + bd2_ref[...]
    d = jnp.dot(d.astype(jnp.bfloat16), wd3_ref[...],
                preferred_element_type=jnp.float32) + bd3_ref[...]
    out_ref[0] = jax.nn.sigmoid(d)


def _full_spec(a):
    nd = a.ndim
    return pl.BlockSpec(a.shape, lambda b, _nd=nd: (0,) * _nd)


def cnn_lstm_hybrid_pallas(x, params):
    """x: (B, T, features) float32 -> (B, 1) float32 (sigmoid head output)."""
    B, T, F = x.shape
    weights = (*params["conv"], *params["lstm"], *params["head"])

    out = pl.pallas_call(
        _fused_kernel,
        out_shape=jax.ShapeDtypeStruct((B, 1, 1), jnp.float32),
        grid=(B,),
        in_specs=[pl.BlockSpec((1, T, F), lambda b: (b, 0, 0))]
                 + [_full_spec(w) for w in weights],
        out_specs=pl.BlockSpec((1, 1, 1), lambda b: (b, 0, 0)),
        scratch_shapes=[pltpu.VMEM((T, G4), jnp.float32)],   # precomputed layer-1 gates
        compiler_params=pltpu.CompilerParams(
            dimension_semantics=("parallel",)),
    )(x, *weights)
    return out.reshape(B, 1)


# ----------------------------------------------------------------------------
# Parameter init (deterministic, synthetic) and full forward
# ----------------------------------------------------------------------------
def init_params(key, features, hidden=H):
    ks = iter(jax.random.split(key, 32))
    s = 0.1

    def w(shape):  # matmul weights in bf16 (MXU-native), f32 accumulation in-kernel
        return (s * jax.random.normal(next(ks), shape, jnp.float32)).astype(jnp.bfloat16)

    def b(shape):  # biases stay f32
        return s * jax.random.normal(next(ks), shape, jnp.float32)

    # Conv1d weights stored as (3*Cin, Cout): rows [0:Cin) multiply x[t-1],
    # [Cin:2Cin) multiply x[t], [2Cin:3Cin) multiply x[t+1]
    # (PyTorch (Cout, Cin, k) permuted to (k, Cin, Cout) and flattened over (k, Cin)).
    conv = (
        w((3 * features, 64)), b((1, 64)),
        w((3 * 64, 64)),       b((1, 64)),
        w((3 * 64, 64)),       b((1, 64)),
        w((3 * 64, 128)),      b((1, 128)),
    )
    # LSTM weights stored transposed (input, 4H), PyTorch gate order i,f,g,o;
    # bias = b_ih + b_hh pre-summed.
    lstm = (
        w((hidden, 4 * hidden)), w((hidden, 4 * hidden)),
        b((1, 4 * hidden)) + b((1, 4 * hidden)),
        w((hidden, 4 * hidden)), w((hidden, 4 * hidden)),
        b((1, 4 * hidden)) + b((1, 4 * hidden)),
    )
    head = (
        w((hidden, 64)), b((1, 64)),
        w((64, 32)),     b((1, 32)),
        w((32, 1)),      b((1, 1)),
    )
    return {"conv": conv, "lstm": lstm, "head": head}


@functools.partial(jax.jit, static_argnames=("label",))
def cnn_lstm_hybrid_forward(x, params, label=1):
    out = cnn_lstm_hybrid_pallas(x, params)      # (B, 1), sigmoid applied in-kernel
    if label in (0, 1, 2):
        return out
    # TODO(synk): label == 3 branch applies Linear(32,1) to the (B,1) dense3
    # output in the reference PyTorch code (shape-inconsistent); not implemented.
    raise NotImplementedError("label == 3 branch not supported")


if __name__ == "__main__":
    B, T, F = 2, 8, 4
    key = jax.random.PRNGKey(0)
    k_params, k_x = jax.random.split(key)
    params = init_params(k_params, features=F)
    x = jax.random.normal(k_x, (B, T, F), jnp.float32)

    out = cnn_lstm_hybrid_forward(x, params, label=1)
    jax.block_until_ready(out)
    assert out.shape == (B, 1)
    assert bool(jnp.all((out >= 0.0) & (out <= 1.0)))
    print("KERNEL_OK")
</pallas_src>

<mosaic_0001>
module attributes {stable_mosaic.version = 11 : i64} {
  func.func @_fused_kernel(%arg0: i32, %arg1: memref<1x8x4xf32, #tpu.memory_space<vmem>>, %arg2: memref<12x64xbf16, #tpu.memory_space<vmem>>, %arg3: memref<1x64xf32, #tpu.memory_space<vmem>>, %arg4: memref<192x64xbf16, #tpu.memory_space<vmem>>, %arg5: memref<1x64xf32, #tpu.memory_space<vmem>>, %arg6: memref<192x64xbf16, #tpu.memory_space<vmem>>, %arg7: memref<1x64xf32, #tpu.memory_space<vmem>>, %arg8: memref<192x128xbf16, #tpu.memory_space<vmem>>, %arg9: memref<1x128xf32, #tpu.memory_space<vmem>>, %arg10: memref<128x512xbf16, #tpu.memory_space<vmem>>, %arg11: memref<128x512xbf16, #tpu.memory_space<vmem>>, %arg12: memref<1x512xf32, #tpu.memory_space<vmem>>, %arg13: memref<128x512xbf16, #tpu.memory_space<vmem>>, %arg14: memref<128x512xbf16, #tpu.memory_space<vmem>>, %arg15: memref<1x512xf32, #tpu.memory_space<vmem>>, %arg16: memref<128x64xbf16, #tpu.memory_space<vmem>>, %arg17: memref<1x64xf32, #tpu.memory_space<vmem>>, %arg18: memref<64x32xbf16, #tpu.memory_space<vmem>>, %arg19: memref<1x32xf32, #tpu.memory_space<vmem>>, %arg20: memref<32x1xbf16, #tpu.memory_space<vmem>>, %arg21: memref<1x1xf32, #tpu.memory_space<vmem>>, %arg22: memref<1x1x1xf32, #tpu.memory_space<vmem>>, %arg23: memref<8x512xf32, #tpu.memory_space<vmem>>) attributes {dimension_semantics = [#tpu.dimension_semantics<parallel>], iteration_bounds = array<i64: 2>, scalar_prefetch = 0 : i64, scratch_operands = 1 : i64, tpu.core_type = #tpu.core_type<tc>, window_params = [{transform_indices = @transform_0, window_bounds = array<i64: 1, 8, 4>}, {pipeline_mode = #tpu.pipeline_mode<synchronous>, transform_indices = @transform_1, window_bounds = array<i64: 12, 64>}, {pipeline_mode = #tpu.pipeline_mode<synchronous>, transform_indices = @transform_2, window_bounds = array<i64: 1, 64>}, {pipeline_mode = #tpu.pipeline_mode<synchronous>, transform_indices = @transform_3, window_bounds = array<i64: 192, 64>}, {pipeline_mode = #tpu.pipeline_mode<synchronous>, transform_indices = @transform_4, window_bounds = array<i64: 1, 64>}, {pipeline_mode = #tpu.pipeline_mode<synchronous>, transform_indices = @transform_5, window_bounds = array<i64: 192, 64>}, {pipeline_mode = #tpu.pipeline_mode<synchronous>, transform_indices = @transform_6, window_bounds = array<i64: 1, 64>}, {pipeline_mode = #tpu.pipeline_mode<synchronous>, transform_indices = @transform_7, window_bounds = array<i64: 192, 128>}, {pipeline_mode = #tpu.pipeline_mode<synchronous>, transform_indices = @transform_8, window_bounds = array<i64: 1, 128>}, {pipeline_mode = #tpu.pipeline_mode<synchronous>, transform_indices = @transform_9, window_bounds = array<i64: 128, 512>}, {pipeline_mode = #tpu.pipeline_mode<synchronous>, transform_indices = @transform_10, window_bounds = array<i64: 128, 512>}, {pipeline_mode = #tpu.pipeline_mode<synchronous>, transform_indices = @transform_11, window_bounds = array<i64: 1, 512>}, {pipeline_mode = #tpu.pipeline_mode<synchronous>, transform_indices = @transform_12, window_bounds = array<i64: 128, 512>}, {pipeline_mode = #tpu.pipeline_mode<synchronous>, transform_indices = @transform_13, window_bounds = array<i64: 128, 512>}, {pipeline_mode = #tpu.pipeline_mode<synchronous>, transform_indices = @transform_14, window_bounds = array<i64: 1, 512>}, {pipeline_mode = #tpu.pipeline_mode<synchronous>, transform_indices = @transform_15, window_bounds = array<i64: 128, 64>}, {pipeline_mode = #tpu.pipeline_mode<synchronous>, transform_indices = @transform_16, window_bounds = array<i64: 1, 64>}, {pipeline_mode = #tpu.pipeline_mode<synchronous>, transform_indices = @transform_17, window_bounds = array<i64: 64, 32>}, {pipeline_mode = #tpu.pipeline_mode<synchronous>, transform_indices = @transform_18, window_bounds = array<i64: 1, 32>}, {pipeline_mode = #tpu.pipeline_mode<synchronous>, transform_indices = @transform_19, window_bounds = array<i64: 32, 1>}, {pipeline_mode = #tpu.pipeline_mode<synchronous>, transform_indices = @transform_20, window_bounds = array<i64: 1, 1>}, {transform_indices = @transform_21, window_bounds = array<i64: 1, 1, 1>}]} {
    %c0 = arith.constant 0 : index
    %c0_0 = arith.constant 0 : index
    %c0_1 = arith.constant 0 : index
    %0 = vector.load %arg1[%c0, %c0_0, %c0_1] : memref<1x8x4xf32, #tpu.memory_space<vmem>>, vector<1x8x4xf32>
    %1 = vector.shape_cast %0 : vector<1x8x4xf32> to vector<8x4xf32>
    %cst = arith.constant 0.000000e+00 : f32
    %2 = vector.broadcast %cst : f32 to vector<1x4xf32>
    %3 = vector.extract_strided_slice %1 {offsets = [0, 0], sizes = [7, 4], strides = [1, 1]} : vector<8x4xf32> to vector<7x4xf32>
    %4 = tpu.concatenate %2, %3 in 0 : vector<1x4xf32>, vector<7x4xf32> -> vector<8x4xf32>
    %5 = vector.extract_strided_slice %1 {offsets = [1, 0], sizes = [7, 4], strides = [1, 1]} : vector<8x4xf32> to vector<7x4xf32>
    %6 = tpu.concatenate %5, %2 in 0 : vector<7x4xf32>, vector<1x4xf32> -> vector<8x4xf32>
    %7 = tpu.concatenate %4, %1, %6 in 1 : vector<8x4xf32>, vector<8x4xf32>, vector<8x4xf32> -> vector<8x12xf32>
    %8 = arith.truncf %7 : vector<8x12xf32> to vector<8x12xbf16>
    %c0_2 = arith.constant 0 : index
    %c0_3 = arith.constant 0 : index
    %9 = vector.load %arg2[%c0_2, %c0_3] : memref<12x64xbf16, #tpu.memory_space<vmem>>, vector<12x64xbf16>
    %cst_4 = arith.constant dense<0.000000e+00> : vector<8x64xf32>
    %10 = tpu.matmul %8, %9, %cst_4 {dimension_numbers = #tpu.dot_dimension_numbers<[1], [0], [0], [1], [0, 0, 1, 1], [], []>} : vector<8x12xbf16>, vector<12x64xbf16>, vector<8x64xf32> -> vector<8x64xf32>
    %c0_5 = arith.constant 0 : index
    %c0_6 = arith.constant 0 : index
    %11 = vector.load %arg3[%c0_5, %c0_6] : memref<1x64xf32, #tpu.memory_space<vmem>>, vector<1x64xf32>
    %12 = vector.broadcast %11 : vector<1x64xf32> to vector<8x64xf32>
    %13 = arith.addf %10, %12 : vector<8x64xf32>
    %cst_7 = arith.constant 0.000000e+00 : f32
    %14 = vector.broadcast %cst_7 : f32 to vector<8x64xf32>
    %15 = arith.maximumf %13, %14 : vector<8x64xf32>
    %cst_8 = arith.constant 0.000000e+00 : f32
    %16 = vector.broadcast %cst_8 : f32 to vector<1x64xf32>
    %17 = vector.extract_strided_slice %15 {offsets = [0, 0], sizes = [7, 64], strides = [1, 1]} : vector<8x64xf32> to vector<7x64xf32>
    %18 = tpu.concatenate %16, %17 in 0 : vector<1x64xf32>, vector<7x64xf32> -> vector<8x64xf32>
    %19 = vector.extract_strided_slice %15 {offsets = [1, 0], sizes = [7, 64], strides = [1, 1]} : vector<8x64xf32> to vector<7x64xf32>
    %20 = tpu.concatenate %19, %16 in 0 : vector<7x64xf32>, vector<1x64xf32> -> vector<8x64xf32>
    %21 = tpu.concatenate %18, %15, %20 in 1 : vector<8x64xf32>, vector<8x64xf32>, vector<8x64xf32> -> vector<8x192xf32>
    %22 = arith.truncf %21 : vector<8x192xf32> to vector<8x192xbf16>
    %c0_9 = arith.constant 0 : index
    %c0_10 = arith.constant 0 : index
    %23 = vector.load %arg4[%c0_9, %c0_10] : memref<192x64xbf16, #tpu.memory_space<vmem>>, vector<192x64xbf16>
    %cst_11 = arith.constant dense<0.000000e+00> : vector<8x64xf32>
    %24 = tpu.matmul %22, %23, %cst_11 {dimension_numbers = #tpu.dot_dimension_numbers<[1], [0], [0], [1], [0, 0, 1, 1], [], []>} : vector<8x192xbf16>, vector<192x64xbf16>, vector<8x64xf32> -> vector<8x64xf32>
    %c0_12 = arith.constant 0 : index
    %c0_13 = arith.constant 0 : index
    %25 = vector.load %arg5[%c0_12, %c0_13] : memref<1x64xf32, #tpu.memory_space<vmem>>, vector<1x64xf32>
    %26 = vector.broadcast %25 : vector<1x64xf32> to vector<8x64xf32>
    %27 = arith.addf %24, %26 : vector<8x64xf32>
    %cst_14 = arith.constant 0.000000e+00 : f32
    %28 = vector.broadcast %cst_14 : f32 to vector<8x64xf32>
    %29 = arith.maximumf %27, %28 : vector<8x64xf32>
    %cst_15 = arith.constant 0.000000e+00 : f32
    %30 = vector.broadcast %cst_15 : f32 to vector<1x64xf32>
    %31 = vector.extract_strided_slice %29 {offsets = [0, 0], sizes = [7, 64], strides = [1, 1]} : vector<8x64xf32> to vector<7x64xf32>
    %32 = tpu.concatenate %30, %31 in 0 : vector<1x64xf32>, vector<7x64xf32> -> vector<8x64xf32>
    %33 = vector.extract_strided_slice %29 {offsets = [1, 0], sizes = [7, 64], strides = [1, 1]} : vector<8x64xf32> to vector<7x64xf32>
    %34 = tpu.concatenate %33, %30 in 0 : vector<7x64xf32>, vector<1x64xf32> -> vector<8x64xf32>
    %35 = tpu.concatenate %32, %29, %34 in 1 : vector<8x64xf32>, vector<8x64xf32>, vector<8x64xf32> -> vector<8x192xf32>
    %36 = arith.truncf %35 : vector<8x192xf32> to vector<8x192xbf16>
    %c0_16 = arith.constant 0 : index
    %c0_17 = arith.constant 0 : index
    %37 = vector.load %arg6[%c0_16, %c0_17] : memref<192x64xbf16, #tpu.memory_space<vmem>>, vector<192x64xbf16>
    %cst_18 = arith.constant dense<0.000000e+00> : vector<8x64xf32>
    %38 = tpu.matmul %36, %37, %cst_18 {dimension_numbers = #tpu.dot_dimension_numbers<[1], [0], [0], [1], [0, 0, 1, 1], [], []>} : vector<8x192xbf16>, vector<192x64xbf16>, vector<8x64xf32> -> vector<8x64xf32>
    %c0_19 = arith.constant 0 : index
    %c0_20 = arith.constant 0 : index
    %39 = vector.load %arg7[%c0_19, %c0_20] : memref<1x64xf32, #tpu.memory_space<vmem>>, vector<1x64xf32>
    %40 = vector.broadcast %39 : vector<1x64xf32> to vector<8x64xf32>
    %41 = arith.addf %38, %40 : vector<8x64xf32>
    %cst_21 = arith.constant 0.000000e+00 : f32
    %42 = vector.broadcast %cst_21 : f32 to vector<8x64xf32>
    %43 = arith.maximumf %41, %42 : vector<8x64xf32>
    %cst_22 = arith.constant 0.000000e+00 : f32
    %44 = vector.broadcast %cst_22 : f32 to vector<1x64xf32>
    %45 = vector.extract_strided_slice %43 {offsets = [0, 0], sizes = [7, 64], strides = [1, 1]} : vector<8x64xf32> to vector<7x64xf32>
    %46 = tpu.concatenate %44, %45 in 0 : vector<1x64xf32>, vector<7x64xf32> -> vector<8x64xf32>
    %47 = vector.extract_strided_slice %43 {offsets = [1, 0], sizes = [7, 64], strides = [1, 1]} : vector<8x64xf32> to vector<7x64xf32>
    %48 = tpu.concatenate %47, %44 in 0 : vector<7x64xf32>, vector<1x64xf32> -> vector<8x64xf32>
    %49 = tpu.concatenate %46, %43, %48 in 1 : vector<8x64xf32>, vector<8x64xf32>, vector<8x64xf32> -> vector<8x192xf32>
    %50 = arith.truncf %49 : vector<8x192xf32> to vector<8x192xbf16>
    %c0_23 = arith.constant 0 : index
    %c0_24 = arith.constant 0 : index
    %51 = vector.load %arg8[%c0_23, %c0_24] : memref<192x128xbf16, #tpu.memory_space<vmem>>, vector<192x128xbf16>
    %cst_25 = arith.constant dense<0.000000e+00> : vector<8x128xf32>
    %52 = tpu.matmul %50, %51, %cst_25 {dimension_numbers = #tpu.dot_dimension_numbers<[1], [0], [0], [1], [0, 0, 1, 1], [], []>} : vector<8x192xbf16>, vector<192x128xbf16>, vector<8x128xf32> -> vector<8x128xf32>
    %c0_26 = arith.constant 0 : index
    %c0_27 = arith.constant 0 : index
    %53 = vector.load %arg9[%c0_26, %c0_27] : memref<1x128xf32, #tpu.memory_space<vmem>>, vector<1x128xf32>
    %54 = vector.broadcast %53 : vector<1x128xf32> to vector<8x128xf32>
    %55 = arith.addf %52, %54 : vector<8x128xf32>
    %cst_28 = arith.constant 0.000000e+00 : f32
    %56 = vector.broadcast %cst_28 : f32 to vector<8x128xf32>
    %57 = arith.maximumf %55, %56 : vector<8x128xf32>
    %58 = arith.truncf %57 : vector<8x128xf32> to vector<8x128xbf16>
    %c0_29 = arith.constant 0 : index
    %c0_30 = arith.constant 0 : index
    %59 = vector.load %arg10[%c0_29, %c0_30] : memref<128x512xbf16, #tpu.memory_space<vmem>>, vector<128x512xbf16>
    %cst_31 = arith.constant dense<0.000000e+00> : vector<8x512xf32>
    %60 = tpu.matmul %58, %59, %cst_31 {dimension_numbers = #tpu.dot_dimension_numbers<[1], [0], [0], [1], [0, 0, 1, 1], [], []>} : vector<8x128xbf16>, vector<128x512xbf16>, vector<8x512xf32> -> vector<8x512xf32>
    %c0_32 = arith.constant 0 : index
    %c0_33 = arith.constant 0 : index
    %61 = vector.load %arg12[%c0_32, %c0_33] : memref<1x512xf32, #tpu.memory_space<vmem>>, vector<1x512xf32>
    %62 = vector.broadcast %61 : vector<1x512xf32> to vector<8x512xf32>
    %63 = arith.addf %60, %62 : vector<8x512xf32>
    %c0_34 = arith.constant 0 : index
    %c0_35 = arith.constant 0 : index
    %64 = vector.load %arg23[%c0_34, %c0_35] : memref<8x512xf32, #tpu.memory_space<vmem>>, vector<8x512xf32>
    tpu.vector_store %arg23[%c0_34, %c0_35], %63 {strides = array<i32>} : memref<8x512xf32, #tpu.memory_space<vmem>>, vector<8x512xf32>,
    %cst_36 = arith.constant 0.000000e+00 : f32
    %65 = vector.broadcast %cst_36 : f32 to vector<1x128xf32>
    %c0_i32 = arith.constant 0 : i32
    %c8_i32 = arith.constant 8 : i32
    %66 = arith.addi %c0_i32, %c8_i32 : i32
    %c1_i32 = arith.constant 1 : i32
    %67:4 = scf.for %arg24 = %c0_i32 to %66 step %c1_i32 iter_args(%arg25 = %65, %arg26 = %65, %arg27 = %65, %arg28 = %65) -> (vector<1x128xf32>, vector<1x128xf32>, vector<1x128xf32>, vector<1x128xf32>)  : i32 {
      %91 = arith.index_cast %arg24 : i32 to index
      %c0_57 = arith.constant 0 : index
      %92 = vector.load %arg23[%91, %c0_57] : memref<8x512xf32, #tpu.memory_space<vmem>>, vector<1x512xf32>
      %93 = arith.truncf %arg25 : vector<1x128xf32> to vector<1x128xbf16>
      %c0_58 = arith.constant 0 : index
      %c0_59 = arith.constant 0 : index
      %94 = vector.load %arg11[%c0_58, %c0_59] : memref<128x512xbf16, #tpu.memory_space<vmem>>, vector<128x512xbf16>
      %cst_60 = arith.constant dense<0.000000e+00> : vector<1x512xf32>
      %95 = tpu.matmul %93, %94, %cst_60 {dimension_numbers = #tpu.dot_dimension_numbers<[1], [0], [0], [1], [0, 0, 1, 1], [], []>} : vector<1x128xbf16>, vector<128x512xbf16>, vector<1x512xf32> -> vector<1x512xf32>
      %96 = arith.addf %92, %95 : vector<1x512xf32>
      %97 = vector.extract_strided_slice %96 {offsets = [0, 0], sizes = [1, 128], strides = [1, 1]} : vector<1x512xf32> to vector<1x128xf32>
      %98 = arith.negf %97 : vector<1x128xf32>
      %99 = math.exp %98 : vector<1x128xf32>
      %cst_61 = arith.constant 1.000000e+00 : f32
      %100 = vector.broadcast %cst_61 : f32 to vector<1x128xf32>
      %101 = arith.addf %100, %99 : vector<1x128xf32>
      %102 = arith.divf %100, %101 : vector<1x128xf32>
      %103 = vector.extract_strided_slice %96 {offsets = [0, 128], sizes = [1, 128], strides = [1, 1]} : vector<1x512xf32> to vector<1x128xf32>
      %104 = arith.negf %103 : vector<1x128xf32>
      %105 = math.exp %104 : vector<1x128xf32>
      %cst_62 = arith.constant 1.000000e+00 : f32
      %106 = vector.broadcast %cst_62 : f32 to vector<1x128xf32>
      %107 = arith.addf %106, %105 : vector<1x128xf32>
      %108 = arith.divf %106, %107 : vector<1x128xf32>
      %109 = vector.extract_strided_slice %96 {offsets = [0, 256], sizes = [1, 128], strides = [1, 1]} : vector<1x512xf32> to vector<1x128xf32>
      %110 = math.tanh %109 : vector<1x128xf32>
      %111 = vector.extract_strided_slice %96 {offsets = [0, 384], sizes = [1, 128], strides = [1, 1]} : vector<1x512xf32> to vector<1x128xf32>
      %112 = arith.negf %111 : vector<1x128xf32>
      %113 = math.exp %112 : vector<1x128xf32>
      %cst_63 = arith.constant 1.000000e+00 : f32
      %114 = vector.broadcast %cst_63 : f32 to vector<1x128xf32>
      %115 = arith.addf %114, %113 : vector<1x128xf32>
      %116 = arith.divf %114, %115 : vector<1x128xf32>
      %117 = arith.mulf %108, %arg26 : vector<1x128xf32>
      %118 = arith.mulf %102, %110 : vector<1x128xf32>
      %119 = arith.addf %117, %118 : vector<1x128xf32>
      %120 = math.tanh %119 : vector<1x128xf32>
      %121 = arith.mulf %116, %120 : vector<1x128xf32>
      %122 = arith.truncf %121 : vector<1x128xf32> to vector<1x128xbf16>
      %c0_64 = arith.constant 0 : index
      %c0_65 = arith.constant 0 : index
      %123 = vector.load %arg13[%c0_64, %c0_65] : memref<128x512xbf16, #tpu.memory_space<vmem>>, vector<128x512xbf16>
      %cst_66 = arith.constant dense<0.000000e+00> : vector<1x512xf32>
      %124 = tpu.matmul %122, %123, %cst_66 {dimension_numbers = #tpu.dot_dimension_numbers<[1], [0], [0], [1], [0, 0, 1, 1], [], []>} : vector<1x128xbf16>, vector<128x512xbf16>, vector<1x512xf32> -> vector<1x512xf32>
      %125 = arith.truncf %arg27 : vector<1x128xf32> to vector<1x128xbf16>
      %c0_67 = arith.constant 0 : index
      %c0_68 = arith.constant 0 : index
      %126 = vector.load %arg14[%c0_67, %c0_68] : memref<128x512xbf16, #tpu.memory_space<vmem>>, vector<128x512xbf16>
      %cst_69 = arith.constant dense<0.000000e+00> : vector<1x512xf32>
      %127 = tpu.matmul %125, %126, %cst_69 {dimension_numbers = #tpu.dot_dimension_numbers<[1], [0], [0], [1], [0, 0, 1, 1], [], []>} : vector<1x128xbf16>, vector<128x512xbf16>, vector<1x512xf32> -> vector<1x512xf32>
      %128 = arith.addf %124, %127 : vector<1x512xf32>
      %c0_70 = arith.constant 0 : index
      %c0_71 = arith.constant 0 : index
      %129 = vector.load %arg15[%c0_70, %c0_71] : memref<1x512xf32, #tpu.memory_space<vmem>>, vector<1x512xf32>
      %130 = arith.addf %128, %129 : vector<1x512xf32>
      %131 = vector.extract_strided_slice %130 {offsets = [0, 0], sizes = [1, 128], strides = [1, 1]} : vector<1x512xf32> to vector<1x128xf32>
      %132 = arith.negf %131 : vector<1x128xf32>
      %133 = math.exp %132 : vector<1x128xf32>
      %cst_72 = arith.constant 1.000000e+00 : f32
      %134 = vector.broadcast %cst_72 : f32 to vector<1x128xf32>
      %135 = arith.addf %134, %133 : vector<1x128xf32>
      %136 = arith.divf %134, %135 : vector<1x128xf32>
      %137 = vector.extract_strided_slice %130 {offsets = [0, 128], sizes = [1, 128], strides = [1, 1]} : vector<1x512xf32> to vector<1x128xf32>
      %138 = arith.negf %137 : vector<1x128xf32>
      %139 = math.exp %138 : vector<1x128xf32>
      %cst_73 = arith.constant 1.000000e+00 : f32
      %140 = vector.broadcast %cst_73 : f32 to vector<1x128xf32>
      %141 = arith.addf %140, %139 : vector<1x128xf32>
      %142 = arith.divf %140, %141 : vector<1x128xf32>
      %143 = vector.extract_strided_slice %130 {offsets = [0, 256], sizes = [1, 128], strides = [1, 1]} : vector<1x512xf32> to vector<1x128xf32>
      %144 = math.tanh %143 : vector<1x128xf32>
      %145 = vector.extract_strided_slice %130 {offsets = [0, 384], sizes = [1, 128], strides = [1, 1]} : vector<1x512xf32> to vector<1x128xf32>
      %146 = arith.negf %145 : vector<1x128xf32>
      %147 = math.exp %146 : vector<1x128xf32>
      %cst_74 = arith.constant 1.000000e+00 : f32
      %148 = vector.broadcast %cst_74 : f32 to vector<1x128xf32>
      %149 = arith.addf %148, %147 : vector<1x128xf32>
      %150 = arith.divf %148, %149 : vector<1x128xf32>
      %151 = arith.mulf %142, %arg28 : vector<1x128xf32>
      %152 = arith.mulf %136, %144 : vector<1x128xf32>
      %153 = arith.addf %151, %152 : vector<1x128xf32>
      %154 = math.tanh %153 : vector<1x128xf32>
      %155 = arith.mulf %150, %154 : vector<1x128xf32>
      scf.yield %121, %119, %155, %153 : vector<1x128xf32>, vector<1x128xf32>, vector<1x128xf32>, vector<1x128xf32>
    }
    %c8_i32_37 = arith.constant 8 : i32
    %68 = arith.truncf %67#2 : vector<1x128xf32> to vector<1x128xbf16>
    %c0_38 = arith.constant 0 : index
    %c0_39 = arith.constant 0 : index
    %69 = vector.load %arg16[%c0_38, %c0_39] : memref<128x64xbf16, #tpu.memory_space<vmem>>, vector<128x64xbf16>
    %cst_40 = arith.constant dense<0.000000e+00> : vector<1x64xf32>
    %70 = tpu.matmul %68, %69, %cst_40 {dimension_numbers = #tpu.dot_dimension_numbers<[1], [0], [0], [1], [0, 0, 1, 1], [], []>} : vector<1x128xbf16>, vector<128x64xbf16>, vector<1x64xf32> -> vector<1x64xf32>
    %c0_41 = arith.constant 0 : index
    %c0_42 = arith.constant 0 : index
    %71 = vector.load %arg17[%c0_41, %c0_42] : memref<1x64xf32, #tpu.memory_space<vmem>>, vector<1x64xf32>
    %72 = arith.addf %70, %71 : vector<1x64xf32>
    %73 = arith.truncf %72 : vector<1x64xf32> to vector<1x64xbf16>
    %c0_43 = arith.constant 0 : index
    %c0_44 = arith.constant 0 : index
    %74 = vector.load %arg18[%c0_43, %c0_44] : memref<64x32xbf16, #tpu.memory_space<vmem>>, vector<64x32xbf16>
    %cst_45 = arith.constant dense<0.000000e+00> : vector<1x32xf32>
    %75 = tpu.matmul %73, %74, %cst_45 {dimension_numbers = #tpu.dot_dimension_numbers<[1], [0], [0], [1], [0, 0, 1, 1], [], []>} : vector<1x64xbf16>, vector<64x32xbf16>, vector<1x32xf32> -> vector<1x32xf32>
    %c0_46 = arith.constant 0 : index
    %c0_47 = arith.constant 0 : index
    %76 = vector.load %arg19[%c0_46, %c0_47] : memref<1x32xf32, #tpu.memory_space<vmem>>, vector<1x32xf32>
    %77 = arith.addf %75, %76 : vector<1x32xf32>
    %78 = arith.truncf %77 : vector<1x32xf32> to vector<1x32xbf16>
    %c0_48 = arith.constant 0 : index
    %c0_49 = arith.constant 0 : index
    %79 = vector.load %arg20[%c0_48, %c0_49] : memref<32x1xbf16, #tpu.memory_space<vmem>>, vector<32x1xbf16>
    %cst_50 = arith.constant dense<0.000000e+00> : vector<1x1xf32>
    %80 = tpu.matmul %78, %79, %cst_50 {dimension_numbers = #tpu.dot_dimension_numbers<[1], [0], [0], [1], [0, 0, 1, 1], [], []>} : vector<1x32xbf16>, vector<32x1xbf16>, vector<1x1xf32> -> vector<1x1xf32>
    %c0_51 = arith.constant 0 : index
    %c0_52 = arith.constant 0 : index
    %81 = vector.load %arg21[%c0_51, %c0_52] : memref<1x1xf32, #tpu.memory_space<vmem>>, vector<1x1xf32>
    %82 = arith.addf %80, %81 : vector<1x1xf32>
    %83 = arith.negf %82 : vector<1x1xf32>
    %84 = math.exp %83 : vector<1x1xf32>
    %cst_53 = arith.constant 1.000000e+00 : f32
    %85 = vector.broadcast %cst_53 : f32 to vector<1x1xf32>
    %86 = arith.addf %85, %84 : vector<1x1xf32>
    %87 = arith.divf %85, %86 : vector<1x1xf32>
    %c0_54 = arith.constant 0 : index
    %c0_55 = arith.constant 0 : index
    %c0_56 = arith.constant 0 : index
    %88 = vector.load %arg22[%c0_54, %c0_55, %c0_56] : memref<1x1x1xf32, #tpu.memory_space<vmem>>, vector<1x1x1xf32>
    %89 = vector.shape_cast %88 : vector<1x1x1xf32> to vector<1x1xf32>
    %90 = vector.shape_cast %87 : vector<1x1xf32> to vector<1x1x1xf32>
    tpu.vector_store %arg22[%c0_54, %c0_55, %c0_56], %90 {strides = array<i32>} : memref<1x1x1xf32, #tpu.memory_space<vmem>>, vector<1x1x1xf32>,
    return
  }
  func.func @transform_0(%arg0: i32) -> (i32, i32, i32) {
    %c0_i32 = arith.constant 0 : i32
    %c0_i32_0 = arith.constant 0 : i32
    %c0_i32_1 = arith.constant 0 : i32
    return %arg0, %c0_i32, %c0_i32_0 : i32, i32, i32
  }
  func.func @transform_1(%arg0: i32) -> (i32, i32) {
    %c0_i32 = arith.constant 0 : i32
    %c0_i32_0 = arith.constant 0 : i32
    %c0_i32_1 = arith.constant 0 : i32
    return %c0_i32, %c0_i32_0 : i32, i32
  }
  func.func @transform_2(%arg0: i32) -> (i32, i32) {
    %c0_i32 = arith.constant 0 : i32
    %c0_i32_0 = arith.constant 0 : i32
    %c0_i32_1 = arith.constant 0 : i32
    return %c0_i32, %c0_i32_0 : i32, i32
  }
  func.func @transform_3(%arg0: i32) -> (i32, i32) {
    %c0_i32 = arith.constant 0 : i32
    %c0_i32_0 = arith.constant 0 : i32
    %c0_i32_1 = arith.constant 0 : i32
    return %c0_i32, %c0_i32_0 : i32, i32
  }
  func.func @transform_4(%arg0: i32) -> (i32, i32) {
    %c0_i32 = arith.constant 0 : i32
    %c0_i32_0 = arith.constant 0 : i32
    %c0_i32_1 = arith.constant 0 : i32
    return %c0_i32, %c0_i32_0 : i32, i32
  }
  func.func @transform_5(%arg0: i32) -> (i32, i32) {
    %c0_i32 = arith.constant 0 : i32
    %c0_i32_0 = arith.constant 0 : i32
    %c0_i32_1 = arith.constant 0 : i32
    return %c0_i32, %c0_i32_0 : i32, i32
  }
  func.func @transform_6(%arg0: i32) -> (i32, i32) {
    %c0_i32 = arith.constant 0 : i32
    %c0_i32_0 = arith.constant 0 : i32
    %c0_i32_1 = arith.constant 0 : i32
    return %c0_i32, %c0_i32_0 : i32, i32
  }
  func.func @transform_7(%arg0: i32) -> (i32, i32) {
    %c0_i32 = arith.constant 0 : i32
    %c0_i32_0 = arith.constant 0 : i32
    %c0_i32_1 = arith.constant 0 : i32
    return %c0_i32, %c0_i32_0 : i32, i32
  }
  func.func @transform_8(%arg0: i32) -> (i32, i32) {
    %c0_i32 = arith.constant 0 : i32
    %c0_i32_0 = arith.constant 0 : i32
    %c0_i32_1 = arith.constant 0 : i32
    return %c0_i32, %c0_i32_0 : i32, i32
  }
  func.func @transform_9(%arg0: i32) -> (i32, i32) {
    %c0_i32 = arith.constant 0 : i32
    %c0_i32_0 = arith.constant 0 : i32
    %c0_i32_1 = arith.constant 0 : i32
    return %c0_i32, %c0_i32_0 : i32, i32
  }
  func.func @transform_10(%arg0: i32) -> (i32, i32) {
    %c0_i32 = arith.constant 0 : i32
    %c0_i32_0 = arith.constant 0 : i32
    %c0_i32_1 = arith.constant 0 : i32
    return %c0_i32, %c0_i32_0 : i32, i32
  }
  func.func @transform_11(%arg0: i32) -> (i32, i32) {
    %c0_i32 = arith.constant 0 : i32
    %c0_i32_0 = arith.constant 0 : i32
    %c0_i32_1 = arith.constant 0 : i32
    return %c0_i32, %c0_i32_0 : i32, i32
  }
  func.func @transform_12(%arg0: i32) -> (i32, i32) {
    %c0_i32 = arith.constant 0 : i32
    %c0_i32_0 = arith.constant 0 : i32
    %c0_i32_1 = arith.constant 0 : i32
    return %c0_i32, %c0_i32_0 : i32, i32
  }
  func.func @transform_13(%arg0: i32) -> (i32, i32) {
    %c0_i32 = arith.constant 0 : i32
    %c0_i32_0 = arith.constant 0 : i32
    %c0_i32_1 = arith.constant 0 : i32
    return %c0_i32, %c0_i32_0 : i32, i32
  }
  func.func @transform_14(%arg0: i32) -> (i32, i32) {
    %c0_i32 = arith.constant 0 : i32
    %c0_i32_0 = arith.constant 0 : i32
    %c0_i32_1 = arith.constant 0 : i32
    return %c0_i32, %c0_i32_0 : i32, i32
  }
  func.func @transform_15(%arg0: i32) -> (i32, i32) {
    %c0_i32 = arith.constant 0 : i32
    %c0_i32_0 = arith.constant 0 : i32
    %c0_i32_1 = arith.constant 0 : i32
    return %c0_i32, %c0_i32_0 : i32, i32
  }
  func.func @transform_16(%arg0: i32) -> (i32, i32) {
    %c0_i32 = arith.constant 0 : i32
    %c0_i32_0 = arith.constant 0 : i32
    %c0_i32_1 = arith.constant 0 : i32
    return %c0_i32, %c0_i32_0 : i32, i32
  }
  func.func @transform_17(%arg0: i32) -> (i32, i32) {
    %c0_i32 = arith.constant 0 : i32
    %c0_i32_0 = arith.constant 0 : i32
    %c0_i32_1 = arith.constant 0 : i32
    return %c0_i32, %c0_i32_0 : i32, i32
  }
  func.func @transform_18(%arg0: i32) -> (i32, i32) {
    %c0_i32 = arith.constant 0 : i32
    %c0_i32_0 = arith.constant 0 : i32
    %c0_i32_1 = arith.constant 0 : i32
    return %c0_i32, %c0_i32_0 : i32, i32
  }
  func.func @transform_19(%arg0: i32) -> (i32, i32) {
    %c0_i32 = arith.constant 0 : i32
    %c0_i32_0 = arith.constant 0 : i32
    %c0_i32_1 = arith.constant 0 : i32
    return %c0_i32, %c0_i32_0 : i32, i32
  }
  func.func @transform_20(%arg0: i32) -> (i32, i32) {
    %c0_i32 = arith.constant 0 : i32
    %c0_i32_0 = arith.constant 0 : i32
    %c0_i32_1 = arith.constant 0 : i32
    return %c0_i32, %c0_i32_0 : i32, i32
  }
  func.func @transform_21(%arg0: i32) -> (i32, i32, i32) {
    %c0_i32 = arith.constant 0 : i32
    %c0_i32_0 = arith.constant 0 : i32
    %c0_i32_1 = arith.constant 0 : i32
    return %arg0, %c0_i32, %c0_i32_0 : i32, i32, i32
  }
}

</mosaic_0001>

<llo_original>
// kernel: cnn_lstm_hybrid_forward.1
$region0: #{cnn_lstm_hybrid_forward.1}
  #allocation0 [shape = 'u32[]', space=smem, size = 0x4, offset = 0x4, fixed_abs, tag = 'smem constant byte address 0x4 - core index']
  #allocation1 [shape = 'u32[144,128]{1,0:T(1,128)}', space=vmem, size = 0x12000, scoped, tag = 'internal scratch']
  #allocation2 [shape = 'f32[8,512]{1,0:T(8,128)}', space=vmem, size = 0x4000, scoped, tag = 'scratch operand']
  #allocation3 [shape = 'f32[1,1]{1,0:T(1,128)S(1)}', space=vmem, size = 0x200, scoped, tag = 'scoped memory for cnn_lstm_hybrid_forward.1']
  %s0 = inlined_call_operand.vmem [shape: f32[2,8,4], index: 0, kind: input, shape index: {}]
  %s1 = inlined_call_operand.hbm [shape: bf16[12,64], index: 1, kind: input, shape index: {}]
  %s2 = inlined_call_operand.hbm [shape: f32[1,64], index: 2, kind: input, shape index: {}]
  %s3 = inlined_call_operand.vmem [shape: bf16[192,64], index: 3, kind: input, shape index: {}]
  %s4 = inlined_call_operand.vmem [shape: f32[1,64], index: 4, kind: input, shape index: {}]
  %s5 = inlined_call_operand.vmem [shape: bf16[192,64], index: 5, kind: input, shape index: {}]
  %s6 = inlined_call_operand.vmem [shape: f32[1,64], index: 6, kind: input, shape index: {}]
  %s7 = inlined_call_operand.hbm [shape: bf16[192,128], index: 7, kind: input, shape index: {}]
  %s8 = inlined_call_operand.vmem [shape: f32[1,128], index: 8, kind: input, shape index: {}]
  %s9 = inlined_call_operand.vmem [shape: bf16[128,512], index: 9, kind: input, shape index: {}]
  %s10 = inlined_call_operand.vmem [shape: bf16[128,512], index: 10, kind: input, shape index: {}]
  %s11 = inlined_call_operand.vmem [shape: f32[1,512], index: 11, kind: input, shape index: {}]
  %s12 = inlined_call_operand.hbm [shape: bf16[128,512], index: 12, kind: input, shape index: {}]
  %s13 = inlined_call_operand.hbm [shape: bf16[128,512], index: 13, kind: input, shape index: {}]
  %s14 = inlined_call_operand.vmem [shape: f32[1,512], index: 14, kind: input, shape index: {}]
  %s15 = inlined_call_operand.vmem [shape: bf16[128,64], index: 15, kind: input, shape index: {}]
  %s16 = inlined_call_operand.vmem [shape: f32[1,64], index: 16, kind: input, shape index: {}]
  %s17 = inlined_call_operand.vmem [shape: bf16[64,32], index: 17, kind: input, shape index: {}]
  %s18 = inlined_call_operand.vmem [shape: f32[1,32], index: 18, kind: input, shape index: {}]
  %s19 = inlined_call_operand.vmem [shape: bf16[32,1], index: 19, kind: input, shape index: {}]
  %s20 = inlined_call_operand.<no memory space> [shape: f32[1,1], index: 20, kind: input, shape index: {}]
  %s21 = inlined_call_operand.vmem [shape: f32[2,1,1], index: 21, kind: output, shape index: {}]
  %s22 = sld [smem:[#allocation0]]
  $region144: #{cnn_lstm_hybrid_forward.1} parent=0
    _
  %s24 = ssub.s32 1, %s22
  %s25 = scalar_select 0, %s24, %s22
  %v26 = vstv %s20
  %27 = vst [vmem:[#allocation3] sm:$0x1] %v26
  $region1: #{cnn_lstm_hybrid_forward.1} parent=0
    #allocation4 [shape = 'u8[4096]{0}', space=vmem, size = 0x1000, scoped, tag = 'input window, operand 1, single buffered']
    #allocation5 [shape = 's32[2]{0}', space=sflag, size = 0x8, scoped, tag = 'scoped memory for cnn_lstm_hybrid_forward.1']
    #allocation6 [shape = 'u8[512]{0}', space=vmem, size = 0x400, scoped, tag = 'input window, operand 2, single buffered']
    #allocation7 [shape = 's32[1]{0}', space=sflag, size = 0x4, scoped, tag = 'scoped memory for cnn_lstm_hybrid_forward.1']
    #allocation8 [shape = 'u8[49152]{0}', space=vmem, size = 0xc000, scoped, tag = 'input window, operand 7, single buffered']
    #allocation9 [shape = 'u8[131072]{0}', space=vmem, size = 0x20000, scoped, tag = 'input window, operand 12, single buffered']
    #allocation10 [shape = 's32[1]{0}', space=sflag, size = 0x4, scoped, tag = 'scoped memory for cnn_lstm_hybrid_forward.1']
    #allocation11 [shape = 'u8[131072]{0}', space=vmem, size = 0x20000, scoped, tag = 'input window, operand 13, single buffered']
    %28 = vsyncpa [#allocation5], 0
    %29 = vsyncpa [#allocation7], 0
    %30 = vsyncpa [#allocation10], 0
    loop: start=0, step=1, limit=4
    $region2: #{cnn_lstm_hybrid_forward.1} parent=1 // loop_pre_header
      _
    $region3: #{cnn_lstm_hybrid_forward.1} parent=1 // loop_header
      %s32 = sphi 0, %s36
      %p33 = scmp.ge.s32.totalorder %s32, 4
      %s42 = sphi 0, %s44
      %s45 = sphi 0, %s42
      %s46 = sphi 0, %s45
      %s62 = sphi 0, %s46
      %s66 = sphi 0, %s66
      %s68 = sphi 0, %s66
      %s69 = sphi 0, %s68
      %s83 = sphi 0, %s69
      %s87 = sphi 0, %s87
      %s89 = sphi 0, %s87
      %s90 = sphi 0, %s89
      %s104 = sphi 0, %s90
      %s108 = sphi 0, %s108
      %s110 = sphi 0, %s108
      %s111 = sphi 0, %s110
      %s125 = sphi 0, %s111
      %s129 = sphi 0, %s129
      %s131 = sphi 0, %s129
      %s132 = sphi 0, %s131
      %s146 = sphi 0, %s132
      %s150 = sphi 0, %s150
      %s152 = sphi 0, %s150
      %s153 = sphi 0, %s152
      %s167 = sphi 0, %s153
      %s171 = sphi 0, %s171
      %s173 = sphi 0, %s171
      %s174 = sphi 0, %s173
      %s188 = sphi 0, %s174
      %s192 = sphi 0, %s192
      %s194 = sphi 0, %s192
      %s195 = sphi 0, %s194
      %s209 = sphi 0, %s195
      %s213 = sphi 0, %s213
      %s215 = sphi 0, %s213
      %s216 = sphi 0, %s215
      %s230 = sphi 0, %s216
      %s234 = sphi 0, %s234
      %s236 = sphi 0, %s234
      %s237 = sphi 0, %s236
      %s251 = sphi 0, %s237
      %s255 = sphi 0, %s255
      %s257 = sphi 0, %s255
      %s258 = sphi 0, %s257
      %s272 = sphi 0, %s258
      %s276 = sphi 0, %s276
      %s278 = sphi 0, %s276
      %s279 = sphi 0, %s278
      %s293 = sphi 0, %s279
      %s297 = sphi 0, %s297
      %s299 = sphi 0, %s297
      %s300 = sphi 0, %s299
      %s314 = sphi 0, %s300
      %s318 = sphi 0, %s318
      %s320 = sphi 0, %s318
      %s321 = sphi 0, %s320
      %s335 = sphi 0, %s321
      %s339 = sphi 0, %s339
      %s341 = sphi 0, %s339
      %s342 = sphi 0, %s341
      %s356 = sphi 0, %s342
      %s360 = sphi 0, %s360
      %s362 = sphi 0, %s360
      %s363 = sphi 0, %s362
      %s377 = sphi 0, %s363
      %s381 = sphi 0, %s381
      %s383 = sphi 0, %s381
      %s384 = sphi 0, %s383
      %s398 = sphi 0, %s384
      %s402 = sphi 0, %s402
      %s404 = sphi 0, %s402
      %s405 = sphi 0, %s404
      %s419 = sphi 0, %s405
      %s423 = sphi 0, %s423
      %s425 = sphi 0, %s423
      %s426 = sphi 0, %s425
      %s440 = sphi 0, %s426
      %s444 = sphi 0, %s444
      %s446 = sphi 0, %s444
      %s447 = sphi 0, %s446
      %s461 = sphi 0, %s447
      %s465 = sphi 0, %s465
      %s467 = sphi 0, %s465
      %s468 = sphi 0, %s467
      %s482 = sphi 0, %s468
      %s488 = sphi 0, %s490
      %s491 = sphi 0, %s488
      %s492 = sphi 0, %s491
      %s508 = sphi 0, %s492
    $region4: #{cnn_lstm_hybrid_forward.1} parent=1 // loop_header_branch
      %35 = sbr.rel (%p33) target = $region8
    $region5: #{cnn_lstm_hybrid_forward.1} parent=1 // loop_body
      %s37 = ssub.s32 %s32, 1
      %s38 = ssub.s32 %s32, 2
      %s39 = sadd.s32 %s32, 1
      %s40 = ssub.s32 %s32, %s39
      %p41 = scmp.eq.s32.totalorder %s40, 0
      %s43 = sadd.s32 %s42, 1
      %s44 = scalar_select %p41, %s42, %s43
      %p47 = pneg %p41
      %p48 = scmp.eq.s32.totalorder %s32, 1
      %p49 = por %p47, %p48
      %p50 = scmp.ne.s32.totalorder %s42, %s45
      %p51 = scmp.eq.s32.totalorder %s32, 0
      %p52 = por %p50, %p51
      %p53 = scmp.ne.s32.totalorder %s42, %s45
      %p54 = scmp.eq.s32.totalorder %s37, 1
      %p55 = por %p53, %p54
      %p56 = scmp.ne.s32.totalorder %s45, %s46
      %p57 = scmp.eq.s32.totalorder %s37, 0
      %p58 = por %p56, %p57
      %p59 = scmp.ne.s32.totalorder %s45, %s46
      %p60 = scmp.eq.s32.totalorder %s38, 1
      %p61 = por %p59, %p60
      %p63 = scmp.ne.s32.totalorder %s46, %s62
      %p64 = scmp.eq.s32.totalorder %s38, 0
      %p65 = por %p63, %p64
      %s67 = sadd.s32 %s66, 1
      %p70 = scmp.eq.s32.totalorder %s32, 1
      %p71 = scmp.ne.s32.totalorder %s66, %s68
      %p72 = scmp.eq.s32.totalorder %s32, 0
      %p73 = por %p71, %p72
      %p74 = scmp.ne.s32.totalorder %s66, %s68
      %p75 = scmp.eq.s32.totalorder %s37, 1
      %p76 = por %p74, %p75
      %p77 = scmp.ne.s32.totalorder %s68, %s69
      %p78 = scmp.eq.s32.totalorder %s37, 0
      %p79 = por %p77, %p78
      %p80 = scmp.ne.s32.totalorder %s68, %s69
      %p81 = scmp.eq.s32.totalorder %s38, 1
      %p82 = por %p80, %p81
      %p84 = scmp.ne.s32.totalorder %s69, %s83
      %p85 = scmp.eq.s32.totalorder %s38, 0
      %p86 = por %p84, %p85
      %s88 = sadd.s32 %s87, 1
      %p91 = scmp.eq.s32.totalorder %s32, 1
      %p92 = scmp.ne.s32.totalorder %s87, %s89
      %p93 = scmp.eq.s32.totalorder %s32, 0
      %p94 = por %p92, %p93
      %p95 = scmp.ne.s32.totalorder %s87, %s89
      %p96 = scmp.eq.s32.totalorder %s37, 1
      %p97 = por %p95, %p96
      %p98 = scmp.ne.s32.totalorder %s89, %s90
      %p99 = scmp.eq.s32.totalorder %s37, 0
      %p100 = por %p98, %p99
      %p101 = scmp.ne.s32.totalorder %s89, %s90
      %p102 = scmp.eq.s32.totalorder %s38, 1
      %p103 = por %p101, %p102
      %p105 = scmp.ne.s32.totalorder %s90, %s104
      %p106 = scmp.eq.s32.totalorder %s38, 0
      %p107 = por %p105, %p106
      %s109 = sadd.s32 %s108, 1
      %p112 = scmp.eq.s32.totalorder %s32, 1
      %p113 = scmp.ne.s32.totalorder %s108, %s110
      %p114 = scmp.eq.s32.totalorder %s32, 0
      %p115 = por %p113, %p114
      %p116 = scmp.ne.s32.totalorder %s108, %s110
      %p117 = scmp.eq.s32.totalorder %s37, 1
      %p118 = por %p116, %p117
      %p119 = scmp.ne.s32.totalorder %s110, %s111
      %p120 = scmp.eq.s32.totalorder %s37, 0
      %p121 = por %p119, %p120
      %p122 = scmp.ne.s32.totalorder %s110, %s111
      %p123 = scmp.eq.s32.totalorder %s38, 1
      %p124 = por %p122, %p123
      %p126 = scmp.ne.s32.totalorder %s111, %s125
      %p127 = scmp.eq.s32.totalorder %s38, 0
      %p128 = por %p126, %p127
      %s130 = sadd.s32 %s129, 1
      %p133 = scmp.eq.s32.totalorder %s32, 1
      %p134 = scmp.ne.s32.totalorder %s129, %s131
      %p135 = scmp.eq.s32.totalorder %s32, 0
      %p136 = por %p134, %p135
      %p137 = scmp.ne.s32.totalorder %s129, %s131
      %p138 = scmp.eq.s32.totalorder %s37, 1
      %p139 = por %p137, %p138
      %p140 = scmp.ne.s32.totalorder %s131, %s132
      %p141 = scmp.eq.s32.totalorder %s37, 0
      %p142 = por %p140, %p141
      %p143 = scmp.ne.s32.totalorder %s131, %s132
      %p144 = scmp.eq.s32.totalorder %s38, 1
      %p145 = por %p143, %p144
      %p147 = scmp.ne.s32.totalorder %s132, %s146
      %p148 = scmp.eq.s32.totalorder %s38, 0
      %p149 = por %p147, %p148
      %s151 = sadd.s32 %s150, 1
      %p154 = scmp.eq.s32.totalorder %s32, 1
      %p155 = scmp.ne.s32.totalorder %s150, %s152
      %p156 = scmp.eq.s32.totalorder %s32, 0
      %p157 = por %p155, %p156
      %p158 = scmp.ne.s32.totalorder %s150, %s152
      %p159 = scmp.eq.s32.totalorder %s37, 1
      %p160 = por %p158, %p159
      %p161 = scmp.ne.s32.totalorder %s152, %s153
      %p162 = scmp.eq.s32.totalorder %s37, 0
      %p163 = por %p161, %p162
      %p164 = scmp.ne.s32.totalorder %s152, %s153
      %p165 = scmp.eq.s32.totalorder %s38, 1
      %p166 = por %p164, %p165
      %p168 = scmp.ne.s32.totalorder %s153, %s167
      %p169 = scmp.eq.s32.totalorder %s38, 0
      %p170 = por %p168, %p169
      %s172 = sadd.s32 %s171, 1
      %p175 = scmp.eq.s32.totalorder %s32, 1
      %p176 = scmp.ne.s32.totalorder %s171, %s173
      %p177 = scmp.eq.s32.totalorder %s32, 0
      %p178 = por %p176, %p177
      %p179 = scmp.ne.s32.totalorder %s171, %s173
      %p180 = scmp.eq.s32.totalorder %s37, 1
      %p181 = por %p179, %p180
      %p182 = scmp.ne.s32.totalorder %s173, %s174
      %p183 = scmp.eq.s32.totalorder %s37, 0
      %p184 = por %p182, %p183
      %p185 = scmp.ne.s32.totalorder %s173, %s174
      %p186 = scmp.eq.s32.totalorder %s38, 1
      %p187 = por %p185, %p186
      %p189 = scmp.ne.s32.totalorder %s174, %s188
      %p190 = scmp.eq.s32.totalorder %s38, 0
      %p191 = por %p189, %p190
      %s193 = sadd.s32 %s192, 1
      %p196 = scmp.eq.s32.totalorder %s32, 1
      %p197 = scmp.ne.s32.totalorder %s192, %s194
      %p198 = scmp.eq.s32.totalorder %s32, 0
      %p199 = por %p197, %p198
      %p200 = scmp.ne.s32.totalorder %s192, %s194
      %p201 = scmp.eq.s32.totalorder %s37, 1
      %p202 = por %p200, %p201
      %p203 = scmp.ne.s32.totalorder %s194, %s195
      %p204 = scmp.eq.s32.totalorder %s37, 0
      %p205 = por %p203, %p204
      %p206 = scmp.ne.s32.totalorder %s194, %s195
      %p207 = scmp.eq.s32.totalorder %s38, 1
      %p208 = por %p206, %p207
      %p210 = scmp.ne.s32.totalorder %s195, %s209
      %p211 = scmp.eq.s32.totalorder %s38, 0
      %p212 = por %p210, %p211
      %s214 = sadd.s32 %s213, 1
      %p217 = scmp.eq.s32.totalorder %s32, 1
      %p218 = scmp.ne.s32.totalorder %s213, %s215
      %p219 = scmp.eq.s32.totalorder %s32, 0
      %p220 = por %p218, %p219
      %p221 = scmp.ne.s32.totalorder %s213, %s215
      %p222 = scmp.eq.s32.totalorder %s37, 1
      %p223 = por %p221, %p222
      %p224 = scmp.ne.s32.totalorder %s215, %s216
      %p225 = scmp.eq.s32.totalorder %s37, 0
      %p226 = por %p224, %p225
      %p227 = scmp.ne.s32.totalorder %s215, %s216
      %p228 = scmp.eq.s32.totalorder %s38, 1
      %p229 = por %p227, %p228
      %p231 = scmp.ne.s32.totalorder %s216, %s230
      %p232 = scmp.eq.s32.totalorder %s38, 0
      %p233 = por %p231, %p232
      %s235 = sadd.s32 %s234, 1
      %p238 = scmp.eq.s32.totalorder %s32, 1
      %p239 = scmp.ne.s32.totalorder %s234, %s236
      %p240 = scmp.eq.s32.totalorder %s32, 0
      %p241 = por %p239, %p240
      %p242 = scmp.ne.s32.totalorder %s234, %s236
      %p243 = scmp.eq.s32.totalorder %s37, 1
      %p244 = por %p242, %p243
      %p245 = scmp.ne.s32.totalorder %s236, %s237
      %p246 = scmp.eq.s32.totalorder %s37, 0
      %p247 = por %p245, %p246
      %p248 = scmp.ne.s32.totalorder %s236, %s237
      %p249 = scmp.eq.s32.totalorder %s38, 1
      %p250 = por %p248, %p249
      %p252 = scmp.ne.s32.totalorder %s237, %s251
      %p253 = scmp.eq.s32.totalorder %s38, 0
      %p254 = por %p252, %p253
      %s256 = sadd.s32 %s255, 1
      %p259 = scmp.eq.s32.totalorder %s32, 1
      %p260 = scmp.ne.s32.totalorder %s255, %s257
      %p261 = scmp.eq.s32.totalorder %s32, 0
      %p262 = por %p260, %p261
      %p263 = scmp.ne.s32.totalorder %s255, %s257
      %p264 = scmp.eq.s32.totalorder %s37, 1
      %p265 = por %p263, %p264
      %p266 = scmp.ne.s32.totalorder %s257, %s258
      %p267 = scmp.eq.s32.totalorder %s37, 0
      %p268 = por %p266, %p267
      %p269 = scmp.ne.s32.totalorder %s257, %s258
      %p270 = scmp.eq.s32.totalorder %s38, 1
      %p271 = por %p269, %p270
      %p273 = scmp.ne.s32.totalorder %s258, %s272
      %p274 = scmp.eq.s32.totalorder %s38, 0
      %p275 = por %p273, %p274
      %s277 = sadd.s32 %s276, 1
      %p280 = scmp.eq.s32.totalorder %s32, 1
      %p281 = scmp.ne.s32.totalorder %s276, %s278
      %p282 = scmp.eq.s32.totalorder %s32, 0
      %p283 = por %p281, %p282
      %p284 = scmp.ne.s32.totalorder %s276, %s278
      %p285 = scmp.eq.s32.totalorder %s37, 1
      %p286 = por %p284, %p285
      %p287 = scmp.ne.s32.totalorder %s278, %s279
      %p288 = scmp.eq.s32.totalorder %s37, 0
      %p289 = por %p287, %p288
      %p290 = scmp.ne.s32.totalorder %s278, %s279
      %p291 = scmp.eq.s32.totalorder %s38, 1
      %p292 = por %p290, %p291
      %p294 = scmp.ne.s32.totalorder %s279, %s293
      %p295 = scmp.eq.s32.totalorder %s38, 0
      %p296 = por %p294, %p295
      %s298 = sadd.s32 %s297, 1
      %p301 = scmp.eq.s32.totalorder %s32, 1
      %p302 = scmp.ne.s32.totalorder %s297, %s299
      %p303 = scmp.eq.s32.totalorder %s32, 0
      %p304 = por %p302, %p303
      %p305 = scmp.ne.s32.totalorder %s297, %s299
      %p306 = scmp.eq.s32.totalorder %s37, 1
      %p307 = por %p305, %p306
      %p308 = scmp.ne.s32.totalorder %s299, %s300
      %p309 = scmp.eq.s32.totalorder %s37, 0
      %p310 = por %p308, %p309
      %p311 = scmp.ne.s32.totalorder %s299, %s300
      %p312 = scmp.eq.s32.totalorder %s38, 1
      %p313 = por %p311, %p312
      %p315 = scmp.ne.s32.totalorder %s300, %s314
      %p316 = scmp.eq.s32.totalorder %s38, 0
      %p317 = por %p315, %p316
      %s319 = sadd.s32 %s318, 1
      %p322 = scmp.eq.s32.totalorder %s32, 1
      %p323 = scmp.ne.s32.totalorder %s318, %s320
      %p324 = scmp.eq.s32.totalorder %s32, 0
      %p325 = por %p323, %p324
      %p326 = scmp.ne.s32.totalorder %s318, %s320
      %p327 = scmp.eq.s32.totalorder %s37, 1
      %p328 = por %p326, %p327
      %p329 = scmp.ne.s32.totalorder %s320, %s321
      %p330 = scmp.eq.s32.totalorder %s37, 0
      %p331 = por %p329, %p330
      %p332 = scmp.ne.s32.totalorder %s320, %s321
      %p333 = scmp.eq.s32.totalorder %s38, 1
      %p334 = por %p332, %p333
      %p336 = scmp.ne.s32.totalorder %s321, %s335
      %p337 = scmp.eq.s32.totalorder %s38, 0
      %p338 = por %p336, %p337
      %s340 = sadd.s32 %s339, 1
      %p343 = scmp.eq.s32.totalorder %s32, 1
      %p344 = scmp.ne.s32.totalorder %s339, %s341
      %p345 = scmp.eq.s32.totalorder %s32, 0
      %p346 = por %p344, %p345
      %p347 = scmp.ne.s32.totalorder %s339, %s341
      %p348 = scmp.eq.s32.totalorder %s37, 1
      %p349 = por %p347, %p348
      %p350 = scmp.ne.s32.totalorder %s341, %s342
      %p351 = scmp.eq.s32.totalorder %s37, 0
      %p352 = por %p350, %p351
      %p353 = scmp.ne.s32.totalorder %s341, %s342
      %p354 = scmp.eq.s32.totalorder %s38, 1
      %p355 = por %p353, %p354
      %p357 = scmp.ne.s32.totalorder %s342, %s356
      %p358 = scmp.eq.s32.totalorder %s38, 0
      %p359 = por %p357, %p358
      %s361 = sadd.s32 %s360, 1
      %p364 = scmp.eq.s32.totalorder %s32, 1
      %p365 = scmp.ne.s32.totalorder %s360, %s362
      %p366 = scmp.eq.s32.totalorder %s32, 0
      %p367 = por %p365, %p366
      %p368 = scmp.ne.s32.totalorder %s360, %s362
      %p369 = scmp.eq.s32.totalorder %s37, 1
      %p370 = por %p368, %p369
      %p371 = scmp.ne.s32.totalorder %s362, %s363
      %p372 = scmp.eq.s32.totalorder %s37, 0
      %p373 = por %p371, %p372
      %p374 = scmp.ne.s32.totalorder %s362, %s363
      %p375 = scmp.eq.s32.totalorder %s38, 1
      %p376 = por %p374, %p375
      %p378 = scmp.ne.s32.totalorder %s363, %s377
      %p379 = scmp.eq.s32.totalorder %s38, 0
      %p380 = por %p378, %p379
      %s382 = sadd.s32 %s381, 1
      %p385 = scmp.eq.s32.totalorder %s32, 1
      %p386 = scmp.ne.s32.totalorder %s381, %s383
      %p387 = scmp.eq.s32.totalorder %s32, 0
      %p388 = por %p386, %p387
      %p389 = scmp.ne.s32.totalorder %s381, %s383
      %p390 = scmp.eq.s32.totalorder %s37, 1
      %p391 = por %p389, %p390
      %p392 = scmp.ne.s32.totalorder %s383, %s384
      %p393 = scmp.eq.s32.totalorder %s37, 0
      %p394 = por %p392, %p393
      %p395 = scmp.ne.s32.totalorder %s383, %s384
      %p396 = scmp.eq.s32.totalorder %s38, 1
      %p397 = por %p395, %p396
      %p399 = scmp.ne.s32.totalorder %s384, %s398
      %p400 = scmp.eq.s32.totalorder %s38, 0
      %p401 = por %p399, %p400
      %s403 = sadd.s32 %s402, 1
      %p406 = scmp.eq.s32.totalorder %s32, 1
      %p407 = scmp.ne.s32.totalorder %s402, %s404
      %p408 = scmp.eq.s32.totalorder %s32, 0
      %p409 = por %p407, %p408
      %p410 = scmp.ne.s32.totalorder %s402, %s404
      %p411 = scmp.eq.s32.totalorder %s37, 1
      %p412 = por %p410, %p411
      %p413 = scmp.ne.s32.totalorder %s404, %s405
      %p414 = scmp.eq.s32.totalorder %s37, 0
      %p415 = por %p413, %p414
      %p416 = scmp.ne.s32.totalorder %s404, %s405
      %p417 = scmp.eq.s32.totalorder %s38, 1
      %p418 = por %p416, %p417
      %p420 = scmp.ne.s32.totalorder %s405, %s419
      %p421 = scmp.eq.s32.totalorder %s38, 0
      %p422 = por %p420, %p421
      %s424 = sadd.s32 %s423, 1
      %p427 = scmp.eq.s32.totalorder %s32, 1
      %p428 = scmp.ne.s32.totalorder %s423, %s425
      %p429 = scmp.eq.s32.totalorder %s32, 0
      %p430 = por %p428, %p429
      %p431 = scmp.ne.s32.totalorder %s423, %s425
      %p432 = scmp.eq.s32.totalorder %s37, 1
      %p433 = por %p431, %p432
      %p434 = scmp.ne.s32.totalorder %s425, %s426
      %p435 = scmp.eq.s32.totalorder %s37, 0
      %p436 = por %p434, %p435
      %p437 = scmp.ne.s32.totalorder %s425, %s426
      %p438 = scmp.eq.s32.totalorder %s38, 1
      %p439 = por %p437, %p438
      %p441 = scmp.ne.s32.totalorder %s426, %s440
      %p442 = scmp.eq.s32.totalorder %s38, 0
      %p443 = por %p441, %p442
      %s445 = sadd.s32 %s444, 1
      %p448 = scmp.eq.s32.totalorder %s32, 1
      %p449 = scmp.ne.s32.totalorder %s444, %s446
      %p450 = scmp.eq.s32.totalorder %s32, 0
      %p451 = por %p449, %p450
      %p452 = scmp.ne.s32.totalorder %s444, %s446
      %p453 = scmp.eq.s32.totalorder %s37, 1
      %p454 = por %p452, %p453
      %p455 = scmp.ne.s32.totalorder %s446, %s447
      %p456 = scmp.eq.s32.totalorder %s37, 0
      %p457 = por %p455, %p456
      %p458 = scmp.ne.s32.totalorder %s446, %s447
      %p459 = scmp.eq.s32.totalorder %s38, 1
      %p460 = por %p458, %p459
      %p462 = scmp.ne.s32.totalorder %s447, %s461
      %p463 = scmp.eq.s32.totalorder %s38, 0
      %p464 = por %p462, %p463
      %s466 = sadd.s32 %s465, 1
      %p469 = scmp.eq.s32.totalorder %s32, 1
      %p470 = scmp.ne.s32.totalorder %s465, %s467
      %p471 = scmp.eq.s32.totalorder %s32, 0
      %p472 = por %p470, %p471
      %p473 = scmp.ne.s32.totalorder %s465, %s467
      %p474 = scmp.eq.s32.totalorder %s37, 1
      %p475 = por %p473, %p474
      %p476 = scmp.ne.s32.totalorder %s467, %s468
      %p477 = scmp.eq.s32.totalorder %s37, 0
      %p478 = por %p476, %p477
      %p479 = scmp.ne.s32.totalorder %s467, %s468
      %p480 = scmp.eq.s32.totalorder %s38, 1
      %p481 = por %p479, %p480
      %p483 = scmp.ne.s32.totalorder %s468, %s482
      %p484 = scmp.eq.s32.totalorder %s38, 0
      %p485 = por %p483, %p484
      %s486 = ssub.s32 %s32, %s39
      %p487 = scmp.eq.s32.totalorder %s486, 0
      %s489 = sadd.s32 %s488, 1
      %s490 = scalar_select %p487, %s488, %s489
      %p493 = pneg %p487
      %p494 = scmp.eq.s32.totalorder %s32, 1
      %p495 = por %p493, %p494
      %p496 = scmp.ne.s32.totalorder %s488, %s491
      %p497 = scmp.eq.s32.totalorder %s32, 0
      %p498 = por %p496, %p497
      %p499 = scmp.ne.s32.totalorder %s488, %s491
      %p500 = scmp.eq.s32.totalorder %s37, 1
      %p501 = por %p499, %p500
      %p502 = scmp.ne.s32.totalorder %s491, %s492
      %p503 = scmp.eq.s32.totalorder %s37, 0
      %p504 = por %p502, %p503
      %p505 = scmp.ne.s32.totalorder %s491, %s492
      %p506 = scmp.eq.s32.totalorder %s38, 1
      %p507 = por %p505, %p506
      %p509 = scmp.ne.s32.totalorder %s492, %s508
      %p510 = scmp.eq.s32.totalorder %s38, 0
      %p511 = por %p509, %p510
      %p512 = scmp.le.s32.totalorder 1, %s32
      %p513 = scmp.lt.s32.totalorder %s32, 3
      %p514 = pnand %p512, %p513
      %p515 = pneg %p514
      // Predicated region
      $region9: #{cnn_lstm_hybrid_forward.1} parent=5 // pred_check
        _
      $region10: #{cnn_lstm_hybrid_forward.1} parent=5 // pred_check_branch
        %517 = sbr.rel (%p514) target = $region12
      $region11: #{cnn_lstm_hybrid_forward.1} parent=5 // pred_region
        %s518 = ssub.s32 %s32, 1
        // Predicated region
        $region13: #{cnn_lstm_hybrid_forward.1} parent=11 // pred_check
          %p519 = pneg %p79
        $region14: #{cnn_lstm_hybrid_forward.1} parent=11 // pred_check_branch
          %521 = sbr.rel (%p519) target = $region16
        $region15: #{cnn_lstm_hybrid_forward.1} parent=11 // pred_region
          %s523 = ssub.s32 128, 128
          %524 = vsyncadd [#allocation5], %s523
          %s525 = sshll.u32 [#allocation4], 4
          %s526 = int_to_ptr.vmem [resolvable:$true] %s525
          %531 = dma.hbm_to_vmem [thread:$0]  %s1, 128, %s526, [#allocation5], 64, 64, 4
        $region16: #{cnn_lstm_hybrid_forward.1} parent=11 // pred_fallthru
          _
        // Predicated region
        $region17: #{cnn_lstm_hybrid_forward.1} parent=11 // pred_check
          %p532 = pneg %p100
        $region18: #{cnn_lstm_hybrid_forward.1} parent=11 // pred_check_branch
          %534 = sbr.rel (%p532) target = $region20
        $region19: #{cnn_lstm_hybrid_forward.1} parent=11 // pred_region
          %s536 = ssub.s32 16, 16
          %537 = vsyncadd [#allocation7], %s536
          %s539 = sshll.u32 [#allocation6], 4
          %s540 = int_to_ptr.vmem [resolvable:$true] %s539
          %542 = dma.hbm_to_vmem [thread:$0]  %s2, 16, %s540, [#allocation7]
        $region20: #{cnn_lstm_hybrid_forward.1} parent=11 // pred_fallthru
          _
        // Predicated region
        $region21: #{cnn_lstm_hybrid_forward.1} parent=11 // pred_check
          %p543 = pneg %p121
        $region22: #{cnn_lstm_hybrid_forward.1} parent=11 // pred_check_branch
          %545 = sbr.rel (%p543) target = $region24
        $region23: #{cnn_lstm_hybrid_forward.1} parent=11 // pred_region
          _
        $region24: #{cnn_lstm_hybrid_forward.1} parent=11 // pred_fallthru
          _
        // Predicated region
        $region25: #{cnn_lstm_hybrid_forward.1} parent=11 // pred_check
          %p546 = pneg %p142
        $region26: #{cnn_lstm_hybrid_forward.1} parent=11 // pred_check_branch
          %548 = sbr.rel (%p546) target = $region28
        $region27: #{cnn_lstm_hybrid_forward.1} parent=11 // pred_region
          _
        $region28: #{cnn_lstm_hybrid_forward.1} parent=11 // pred_fallthru
          _
        // Predicated region
        $region29: #{cnn_lstm_hybrid_forward.1} parent=11 // pred_check
          %p549 = pneg %p163
        $region30: #{cnn_lstm_hybrid_forward.1} parent=11 // pred_check_branch
          %551 = sbr.rel (%p549) target = $region32
        $region31: #{cnn_lstm_hybrid_forward.1} parent=11 // pred_region
          _
        $region32: #{cnn_lstm_hybrid_forward.1} parent=11 // pred_fallthru
          _
        // Predicated region
        $region33: #{cnn_lstm_hybrid_forward.1} parent=11 // pred_check
          %p552 = pneg %p184
        $region34: #{cnn_lstm_hybrid_forward.1} parent=11 // pred_check_branch
          %554 = sbr.rel (%p552) target = $region36
        $region35: #{cnn_lstm_hybrid_forward.1} parent=11 // pred_region
          _
        $region36: #{cnn_lstm_hybrid_forward.1} parent=11 // pred_fallthru
          _
        // Predicated region
        $region37: #{cnn_lstm_hybrid_forward.1} parent=11 // pred_check
          %p555 = pneg %p205
        $region38: #{cnn_lstm_hybrid_forward.1} parent=11 // pred_check_branch
          %557 = sbr.rel (%p555) target = $region40
        $region39: #{cnn_lstm_hybrid_forward.1} parent=11 // pred_region
          %s559 = ssub.s32 1536, 1536
          %560 = vsyncadd [#allocation7], %s559
          %s561 = sshll.u32 [#allocation8], 4
          %s562 = int_to_ptr.vmem [resolvable:$true] %s561
          %567 = dma.hbm_to_vmem [thread:$0]  %s7, 1536, %s562, [#allocation7], 64, 64, 4
        $region40: #{cnn_lstm_hybrid_forward.1} parent=11 // pred_fallthru
          _
        // Predicated region
        $region41: #{cnn_lstm_hybrid_forward.1} parent=11 // pred_check
          %p568 = pneg %p226
        $region42: #{cnn_lstm_hybrid_forward.1} parent=11 // pred_check_branch
          %570 = sbr.rel (%p568) target = $region44
        $region43: #{cnn_lstm_hybrid_forward.1} parent=11 // pred_region
          _
        $region44: #{cnn_lstm_hybrid_forward.1} parent=11 // pred_fallthru
          _
        // Predicated region
        $region45: #{cnn_lstm_hybrid_forward.1} parent=11 // pred_check
          %p571 = pneg %p247
        $region46: #{cnn_lstm_hybrid_forward.1} parent=11 // pred_check_branch
          %573 = sbr.rel (%p571) target = $region48
        $region47: #{cnn_lstm_hybrid_forward.1} parent=11 // pred_region
          _
        $region48: #{cnn_lstm_hybrid_forward.1} parent=11 // pred_fallthru
          _
        // Predicated region
        $region49: #{cnn_lstm_hybrid_forward.1} parent=11 // pred_check
          %p574 = pneg %p268
        $region50: #{cnn_lstm_hybrid_forward.1} parent=11 // pred_check_branch
          %576 = sbr.rel (%p574) target = $region52
        $region51: #{cnn_lstm_hybrid_forward.1} parent=11 // pred_region
          _
        $region52: #{cnn_lstm_hybrid_forward.1} parent=11 // pred_fallthru
          _
        // Predicated region
        $region53: #{cnn_lstm_hybrid_forward.1} parent=11 // pred_check
          %p577 = pneg %p289
        $region54: #{cnn_lstm_hybrid_forward.1} parent=11 // pred_check_branch
          %579 = sbr.rel (%p577) target = $region56
        $region55: #{cnn_lstm_hybrid_forward.1} parent=11 // pred_region
          _
        $region56: #{cnn_lstm_hybrid_forward.1} parent=11 // pred_fallthru
          _
        // Predicated region
        $region57: #{cnn_lstm_hybrid_forward.1} parent=11 // pred_check
          %p580 = pneg %p310
        $region58: #{cnn_lstm_hybrid_forward.1} parent=11 // pred_check_branch
          %582 = sbr.rel (%p580) target = $region60
        $region59: #{cnn_lstm_hybrid_forward.1} parent=11 // pred_region
          %s584 = ssub.s32 4096, 4096
          %585 = vsyncadd [#allocation10], %s584
          %s586 = sshll.u32 [#allocation9], 4
          %s587 = int_to_ptr.vmem [resolvable:$true] %s586
          %592 = dma.hbm_to_vmem [thread:$0]  %s12, 4096, %s587, [#allocation10], 256, 256, 16
        $region60: #{cnn_lstm_hybrid_forward.1} parent=11 // pred_fallthru
          _
        // Predicated region
        $region61: #{cnn_lstm_hybrid_forward.1} parent=11 // pred_check
          %p593 = pneg %p331
        $region62: #{cnn_lstm_hybrid_forward.1} parent=11 // pred_check_branch
          %595 = sbr.rel (%p593) target = $region64
        $region63: #{cnn_lstm_hybrid_forward.1} parent=11 // pred_region
          %s597 = ssub.s32 4096, 4096
          %598 = vsyncadd [#allocation10], %s597
          %s599 = sshll.u32 [#allocation11], 4
          %s600 = int_to_ptr.vmem [resolvable:$true] %s599
          %605 = dma.hbm_to_vmem [thread:$0]  %s13, 4096, %s600, [#allocation10], 256, 256, 16
        $region64: #{cnn_lstm_hybrid_forward.1} parent=11 // pred_fallthru
          _
        // Predicated region
        $region65: #{cnn_lstm_hybrid_forward.1} parent=11 // pred_check
          %p606 = pneg %p352
        $region66: #{cnn_lstm_hybrid_forward.1} parent=11 // pred_check_branch
          %608 = sbr.rel (%p606) target = $region68
        $region67: #{cnn_lstm_hybrid_forward.1} parent=11 // pred_region
          _
        $region68: #{cnn_lstm_hybrid_forward.1} parent=11 // pred_fallthru
          _
        // Predicated region
        $region69: #{cnn_lstm_hybrid_forward.1} parent=11 // pred_check
          %p609 = pneg %p373
        $region70: #{cnn_lstm_hybrid_forward.1} parent=11 // pred_check_branch
          %611 = sbr.rel (%p609) target = $region72
        $region71: #{cnn_lstm_hybrid_forward.1} parent=11 // pred_region
          _
        $region72: #{cnn_lstm_hybrid_forward.1} parent=11 // pred_fallthru
          _
        // Predicated region
        $region73: #{cnn_lstm_hybrid_forward.1} parent=11 // pred_check
          %p612 = pneg %p394
        $region74: #{cnn_lstm_hybrid_forward.1} parent=11 // pred_check_branch
          %614 = sbr.rel (%p612) target = $region76
        $region75: #{cnn_lstm_hybrid_forward.1} parent=11 // pred_region
          _
        $region76: #{cnn_lstm_hybrid_forward.1} parent=11 // pred_fallthru
          _
        // Predicated region
        $region77: #{cnn_lstm_hybrid_forward.1} parent=11 // pred_check
          %p615 = pneg %p415
        $region78: #{cnn_lstm_hybrid_forward.1} parent=11 // pred_check_branch
          %617 = sbr.rel (%p615) target = $region80
        $region79: #{cnn_lstm_hybrid_forward.1} parent=11 // pred_region
          _
        $region80: #{cnn_lstm_hybrid_forward.1} parent=11 // pred_fallthru
          _
        // Predicated region
        $region81: #{cnn_lstm_hybrid_forward.1} parent=11 // pred_check
          %p618 = pneg %p436
        $region82: #{cnn_lstm_hybrid_forward.1} parent=11 // pred_check_branch
          %620 = sbr.rel (%p618) target = $region84
        $region83: #{cnn_lstm_hybrid_forward.1} parent=11 // pred_region
          _
        $region84: #{cnn_lstm_hybrid_forward.1} parent=11 // pred_fallthru
          _
        // Predicated region
        $region85: #{cnn_lstm_hybrid_forward.1} parent=11 // pred_check
          %p621 = pneg %p457
        $region86: #{cnn_lstm_hybrid_forward.1} parent=11 // pred_check_branch
          %623 = sbr.rel (%p621) target = $region88
        $region87: #{cnn_lstm_hybrid_forward.1} parent=11 // pred_region
          _
        $region88: #{cnn_lstm_hybrid_forward.1} parent=11 // pred_fallthru
          _
        // Predicated region
        $region89: #{cnn_lstm_hybrid_forward.1} parent=11 // pred_check
          %p624 = pneg %p478
        $region90: #{cnn_lstm_hybrid_forward.1} parent=11 // pred_check_branch
          %626 = sbr.rel (%p624) target = $region92
        $region91: #{cnn_lstm_hybrid_forward.1} parent=11 // pred_region
          _
        $region92: #{cnn_lstm_hybrid_forward.1} parent=11 // pred_fallthru
          _
      $region12: #{cnn_lstm_hybrid_forward.1} parent=5 // pred_fallthru
        _
      %p627 = scmp.lt.s32.totalorder %s32, 2
      // Predicated region
      $region93: #{cnn_lstm_hybrid_forward.1} parent=5 // pred_check
        %p628 = pneg %p627
      $region94: #{cnn_lstm_hybrid_forward.1} parent=5 // pred_check_branch
        %630 = sbr.rel (%p628) target = $region96
      $region95: #{cnn_lstm_hybrid_forward.1} parent=5 // pred_region
        // Predicated region
        $region97: #{cnn_lstm_hybrid_forward.1} parent=95 // pred_check
          %p631 = pneg %p52
        $region98: #{cnn_lstm_hybrid_forward.1} parent=95 // pred_check_branch
          %633 = sbr.rel (%p631) target = $region100
        $region99: #{cnn_lstm_hybrid_forward.1} parent=95 // pred_region
          %p634 = scmp.lt.s32.totalorder %s32, 1
          %s635 = scalar_select %p634, %s32, 1
          %s636 = smul.addr %s635, 8
          %s637 = scalar_lea.vmem %s0, %s636
        $region100: #{cnn_lstm_hybrid_forward.1} parent=95 // pred_fallthru
          _
      $region96: #{cnn_lstm_hybrid_forward.1} parent=5 // pred_fallthru
        _
      %p638 = scmp.le.s32.totalorder 1, %s32
      %p639 = scmp.lt.s32.totalorder %s32, 3
      %p640 = pnand %p638, %p639
      %p641 = pneg %p640
      // Predicated region
      $region101: #{cnn_lstm_hybrid_forward.1} parent=5 // pred_check
        _
      $region102: #{cnn_lstm_hybrid_forward.1} parent=5 // pred_check_branch
        %643 = sbr.rel (%p640) target = $region104
      $region103: #{cnn_lstm_hybrid_forward.1} parent=5 // pred_region
        %s644 = ssub.s32 %s32, 1
        // Predicated region
        $region105: #{cnn_lstm_hybrid_forward.1} parent=103 // pred_check
          %p645 = pneg %p79
        $region106: #{cnn_lstm_hybrid_forward.1} parent=103 // pred_check_branch
          %647 = sbr.rel (%p645) target = $region108
        $region107: #{cnn_lstm_hybrid_forward.1} parent=103 // pred_region
          %648 = dma.done [#allocation5], 128
        $region108: #{cnn_lstm_hybrid_forward.1} parent=103 // pred_fallthru
          _
        // Predicated region
        $region109: #{cnn_lstm_hybrid_forward.1} parent=103 // pred_check
          %p649 = pneg %p100
        $region110: #{cnn_lstm_hybrid_forward.1} parent=103 // pred_check_branch
          %651 = sbr.rel (%p649) target = $region112
        $region111: #{cnn_lstm_hybrid_forward.1} parent=103 // pred_region
          %652 = dma.done [#allocation7], 16
        $region112: #{cnn_lstm_hybrid_forward.1} parent=103 // pred_fallthru
          _
        // Predicated region
        $region113: #{cnn_lstm_hybrid_forward.1} parent=103 // pred_check
          %p653 = pneg %p205
        $region114: #{cnn_lstm_hybrid_forward.1} parent=103 // pred_check_branch
          %655 = sbr.rel (%p653) target = $region116
        $region115: #{cnn_lstm_hybrid_forward.1} parent=103 // pred_region
          %656 = dma.done [#allocation7], 1536
        $region116: #{cnn_lstm_hybrid_forward.1} parent=103 // pred_fallthru
          _
        // Predicated region
        $region117: #{cnn_lstm_hybrid_forward.1} parent=103 // pred_check
          %p657 = pneg %p310
        $region118: #{cnn_lstm_hybrid_forward.1} parent=103 // pred_check_branch
          %659 = sbr.rel (%p657) target = $region120
        $region119: #{cnn_lstm_hybrid_forward.1} parent=103 // pred_region
          %660 = dma.done [#allocation10], 4096
        $region120: #{cnn_lstm_hybrid_forward.1} parent=103 // pred_fallthru
          _
        // Predicated region
        $region121: #{cnn_lstm_hybrid_forward.1} parent=103 // pred_check
          %p661 = pneg %p331
        $region122: #{cnn_lstm_hybrid_forward.1} parent=103 // pred_check_branch
          %663 = sbr.rel (%p661) target = $region124
        $region123: #{cnn_lstm_hybrid_forward.1} parent=103 // pred_region
          %664 = dma.done [#allocation10], 4096
        $region124: #{cnn_lstm_hybrid_forward.1} parent=103 // pred_fallthru
          _
        %p665 = scmp.lt.s32.totalorder %s37, 1
        %s666 = scalar_select %p665, %s37, 1
        %s667 = smul.addr %s666, 8
        %s668 = scalar_lea.vmem %s0, %s667
        %p669 = pneg %p58
        %p670 = pneg %p55
        %p671 = pneg %p79
        %p672 = pneg %p76
        %p673 = pneg %p100
        %p674 = pneg %p97
        %p675 = pneg %p121
        %p676 = pneg %p118
        %p677 = pneg %p142
        %p678 = pneg %p139
        %p679 = pneg %p163
        %p680 = pneg %p160
        %p681 = pneg %p184
        %p682 = pneg %p181
        %p683 = pneg %p205
        %p684 = pneg %p202
        %p685 = pneg %p226
        %p686 = pneg %p223
        %p687 = pneg %p247
        %p688 = pneg %p244
        %p689 = pneg %p268
        %p690 = pneg %p265
        %p691 = pneg %p289
        %p692 = pneg %p286
        %p693 = pneg %p310
        %p694 = pneg %p307
        %p695 = pneg %p331
        %p696 = pneg %p328
        %p697 = pneg %p352
        %p698 = pneg %p349
        %p699 = pneg %p373
        %p700 = pneg %p370
        %p701 = pneg %p394
        %p702 = pneg %p391
        %p703 = pneg %p415
        %p704 = pneg %p412
        %p705 = pneg %p436
        %p706 = pneg %p433
        %p707 = pneg %p457
        %p708 = pneg %p454
        %p709 = pneg %p478
        %p710 = pneg %p475
        %p711 = pneg %p504
        %p712 = pneg %p501
        %p713 = scmp.lt.s32.totalorder %s37, 1
        %s714 = scalar_select %p713, %s37, 1
        %s715 = scalar_lea.vmem %s21, %s714
        %p716 = scmp.lt.s32.totalorder %s37, 1
        %s717 = scalar_select %p716, %s37, 1
        %s718 = smul.addr %s717, 8
        %s719 = scalar_lea.vmem %s0, %s718
        %p720 = scmp.lt.s32.totalorder %s37, 1
        %s721 = scalar_select %p720, %s37, 1
        %s722 = scalar_lea.vmem %s21, %s721
        %v724 = vld [vmem:[%s719] sm:$0xff]
        %v726 = vrot.slane %v724, 7
        %vm728 = vcmask 1040384
        %v729 = vsel %vm728, 0.0, %v726
        %v730 = vrot.slane %v724, 1
        %vm732 = vcmask 1046528
        %v733 = vsel %vm732, %v730, 0.0
        %734 = vrot.lane.b32.xlu0 %v724, 4
        %v735 = vpop.permute.xlu0 %734
        %738 = vrot.lane.b32.xlu0 %v733, 8
        %v739 = vpop.permute.xlu0 %738
        %vm741 = vcmask 31744
        %v742 = vsel %vm741, %v729, %v735
        %vm743 = vcmask 64512
        %v744 = vsel %vm743, %v742, %v739
        %v745 = vpack.c.bf16 %v744, %v744
        %v746 = vld [vmem:[#allocation4] sm:$0xf]
        %v747 = vld [vmem:[#allocation4 + $0x4] sm:$0x3]
        %v748 = vld [vmem:[#allocation6] sm:$0x1]
        %v750 = vlaneseq
        %v751 = vshrl.u32 %v750, 7
        %v752 = vsub.s32 0, %v751
        %v753 = vrot.slane %v748, %v752
        %v757 = vunpack.c.l.b16 %v746
        %v758 = vunpack.c.l.b16 %v747
        %v759 = vpack.c.b16 %v758, %v757
        %vm760 = vcmask 97280
        %v762 = vsel %vm760, %v745, 0
        %vm764 = vcmask 1045504
        %v766 = vsel %vm764, %v759, 0
        %768 = vmatprep.subr.bf16.mxu0 0
        %769 = vmatpush1.bf16.msra.mxu0 %v766
        %770 = vmatprep.subr.bf16.mxu0 0
        %771 = vmatpush1.bf16.msra.mxu0 0
        %772 = vmatprep.subr.bf16.mxu0 0
        %773 = vmatpush1.bf16.msra.mxu0 0
        %774 = vmatprep.subr.bf16.mxu0 0
        %775 = vmatpush1.bf16.msra.mxu0 0
        %776 = vmatprep.subr.bf16.mxu0 0
        %777 = vmatpush1.bf16.msra.mxu0 0
        %778 = vmatprep.subr.bf16.mxu0 0
        %779 = vmatpush1.bf16.msra.mxu0 0
        %780 = vmatprep.subr.bf16.mxu0 0
        %781 = vmatpush1.bf16.msra.mxu0 0
        %782 = vmatprep.subr.bf16.mxu0 0
        %783 = vmatpush1.bf16.msra.mxu0 0
        %784 = vmatprep.subr.bf16.mxu0 0
        %785 = vmatpush1.bf16.msra.mxu0 0
        %786 = vmatprep.subr.bf16.mxu0 0
        %787 = vmatpush1.bf16.msra.mxu0 0
        %788 = vmatprep.subr.bf16.mxu0 0
        %789 = vmatpush1.bf16.msra.mxu0 0
        %790 = vmatprep.subr.bf16.mxu0 0
        %791 = vmatpush1.bf16.msra.mxu0 0
        %792 = vmatprep.subr.bf16.mxu0 0
        %793 = vmatpush1.bf16.msra.mxu0 0
        %794 = vmatprep.subr.bf16.mxu0 0
        %795 = vmatpush1.bf16.msra.mxu0 0
        %796 = vmatprep.subr.bf16.mxu0 0
        %797 = vmatpush1.bf16.msra.mxu0 0
        %798 = vmatprep.subr.bf16.mxu0 0
        %799 = vmatpush1.bf16.msra.mxu0 0
        %800 = vmatprep.mubr.bf16.mxu0 0
        %801 = vmatmul.mubr.bf16.gmra.mrb[0].mxu0 %v762
        %v802 = vpop.f32.mrb[0].mxu0
        %v803 = vadd.f32 %v753, %v802
        %v804 = vpop.f32.mrb[0].mxu0
        %v805 = vpop.f32.mrb[0].mxu0
        %v806 = vpop.f32.mrb[0].mxu0
        %807 = vdwg.mxu0
        %v808 = vmax.f32 %v803, 0.0
        %v810 = vrot.slane %v808, 7
        %v812 = vsel %vm728, 0.0, %v810
        %v813 = vrot.slane %v808, 1
        %v815 = vsel %vm732, %v813, 0.0
        %816 = vrot.lane.b32.xlu0 %v808, 64
        %v817 = vpop.permute.xlu0 %816
        %vm819 = vcmask 523264
        %v820 = vsel %vm819, %v812, %v817
        %v821 = vpack.c.bf16 %v820, %v820
        %v822 = vpack.c.bf16 %v815, %v815
        %v823 = vld [vmem:[%s3] sm:$0xf]
        %v824 = vld [vmem:[%s3 + $0x4] sm:$0xf]
        %v825 = vld [vmem:[%s3 + $0x8] sm:$0xf]
        %v826 = vld [vmem:[%s3 + $0xc] sm:$0xf]
        %v827 = vld [vmem:[%s3 + $0x10] sm:$0xf]
        %v828 = vld [vmem:[%s3 + $0x14] sm:$0xf]
        %v829 = vld [vmem:[%s3 + $0x18] sm:$0xf]
        %v830 = vld [vmem:[%s3 + $0x1c] sm:$0xf]
        %v831 = vld [vmem:[%s3 + $0x20] sm:$0xf]
        %v832 = vld [vmem:[%s3 + $0x24] sm:$0xf]
        %v833 = vld [vmem:[%s3 + $0x28] sm:$0xf]
        %v834 = vld [vmem:[%s3 + $0x2c] sm:$0xf]
        %v835 = vld [vmem:[%s3 + $0x30] sm:$0xf]
        %v836 = vld [vmem:[%s3 + $0x34] sm:$0xf]
        %v837 = vld [vmem:[%s3 + $0x38] sm:$0xf]
        %v838 = vld [vmem:[%s3 + $0x3c] sm:$0xf]
        %v839 = vld [vmem:[%s3 + $0x40] sm:$0xf]
        %v840 = vld [vmem:[%s3 + $0x44] sm:$0xf]
        %v841 = vld [vmem:[%s3 + $0x48] sm:$0xf]
        %v842 = vld [vmem:[%s3 + $0x4c] sm:$0xf]
        %v843 = vld [vmem:[%s3 + $0x50] sm:$0xf]
        %v844 = vld [vmem:[%s3 + $0x54] sm:$0xf]
        %v845 = vld [vmem:[%s3 + $0x58] sm:$0xf]
        %v846 = vld [vmem:[%s3 + $0x5c] sm:$0xf]
        %v847 = vld [vmem:[%s4] sm:$0x1]
        %v849 = vlaneseq
        %v850 = vshrl.u32 %v849, 7
        %v851 = vsub.s32 0, %v850
        %v852 = vrot.slane %v847, %v851
        %v878 = vunpack.c.l.b16 %v823
        %v879 = vunpack.c.l.b16 %v824
        %v880 = vunpack.c.l.b16 %v825
        %v881 = vunpack.c.l.b16 %v826
        %v882 = vunpack.c.l.b16 %v827
        %v883 = vunpack.c.l.b16 %v828
        %v884 = vunpack.c.l.b16 %v829
        %v885 = vunpack.c.l.b16 %v830
        %v886 = vunpack.c.l.b16 %v831
        %v887 = vunpack.c.l.b16 %v832
        %v888 = vunpack.c.l.b16 %v833
        %v889 = vunpack.c.l.b16 %v834
        %v890 = vunpack.c.l.b16 %v835
        %v891 = vunpack.c.l.b16 %v836
        %v892 = vunpack.c.l.b16 %v837
        %v893 = vunpack.c.l.b16 %v838
        %v894 = vunpack.c.l.b16 %v839
        %v895 = vunpack.c.l.b16 %v840
        %v896 = vunpack.c.l.b16 %v841
        %v897 = vunpack.c.l.b16 %v842
        %v898 = vunpack.c.l.b16 %v843
        %v899 = vunpack.c.l.b16 %v844
        %v900 = vunpack.c.l.b16 %v845
        %v901 = vunpack.c.l.b16 %v846
        %v902 = vpack.c.b16 %v879, %v878
        %v903 = vpack.c.b16 %v881, %v880
        %v904 = vpack.c.b16 %v883, %v882
        %v905 = vpack.c.b16 %v885, %v884
        %v906 = vpack.c.b16 %v887, %v886
        %v907 = vpack.c.b16 %v889, %v888
        %v908 = vpack.c.b16 %v891, %v890
        %v909 = vpack.c.b16 %v893, %v892
        %v910 = vpack.c.b16 %v895, %v894
        %v911 = vpack.c.b16 %v897, %v896
        %v912 = vpack.c.b16 %v899, %v898
        %v913 = vpack.c.b16 %v901, %v900
        %v927 = vsel %vm819, %v822, 0
        %929 = vmatprep.subr.bf16.mxu0 0
        %930 = vmatpush1.bf16.msra.mxu0 %v902
        %931 = vmatprep.subr.bf16.mxu0 0
        %932 = vmatpush1.bf16.msra.mxu0 %v903
        %933 = vmatprep.subr.bf16.mxu0 0
        %934 = vmatpush1.bf16.msra.mxu0 %v904
        %935 = vmatprep.subr.bf16.mxu0 0
        %936 = vmatpush1.bf16.msra.mxu0 %v905
        %937 = vmatprep.subr.bf16.mxu0 0
        %938 = vmatpush1.bf16.msra.mxu0 %v906
        %939 = vmatprep.subr.bf16.mxu0 0
        %940 = vmatpush1.bf16.msra.mxu0 %v907
        %941 = vmatprep.subr.bf16.mxu0 0
        %942 = vmatpush1.bf16.msra.mxu0 %v908
        %943 = vmatprep.subr.bf16.mxu0 0
        %944 = vmatpush1.bf16.msra.mxu0 %v909
        %945 = vmatprep.subr.bf16.mxu0 0
        %946 = vmatpush1.bf16.msra.mxu0 %v910
        %947 = vmatprep.subr.bf16.mxu0 0
        %948 = vmatpush1.bf16.msra.mxu0 %v911
        %949 = vmatprep.subr.bf16.mxu0 0
        %950 = vmatpush1.bf16.msra.mxu0 %v912
        %951 = vmatprep.subr.bf16.mxu0 0
        %952 = vmatpush1.bf16.msra.mxu0 %v913
        %953 = vmatprep.subr.bf16.mxu0 0
        %954 = vmatpush1.bf16.msra.mxu0 0
        %955 = vmatprep.subr.bf16.mxu0 0
        %956 = vmatpush1.bf16.msra.mxu0 0
        %957 = vmatprep.subr.bf16.mxu0 0
        %958 = vmatpush1.bf16.msra.mxu0 0
        %959 = vmatprep.subr.bf16.mxu0 0
        %960 = vmatpush1.bf16.msra.mxu0 0
        %961 = vmatprep.mubr.bf16.mxu0 %v927
        %962 = vmatmul.mubr.bf16.gmra.mrb[0].mxu0 %v821
        %v963 = vpop.f32.mrb[0].mxu0
        %v964 = vadd.f32 %v852, %v963
        %v965 = vpop.f32.mrb[0].mxu0
        %v966 = vpop.f32.mrb[0].mxu0
        %v967 = vpop.f32.mrb[0].mxu0
        %968 = vdwg.mxu0
        %v969 = vmax.f32 %v964, 0.0
        %v971 = vrot.slane %v969, 7
        %v973 = vsel %vm728, 0.0, %v971
        %v974 = vrot.slane %v969, 1
        %v976 = vsel %vm732, %v974, 0.0
        %977 = vrot.lane.b32.xlu0 %v969, 64
        %v978 = vpop.permute.xlu0 %977
        %v980 = vsel %vm819, %v973, %v978
        %v981 = vpack.c.bf16 %v980, %v980
        %v982 = vpack.c.bf16 %v976, %v976
        %v983 = vld [vmem:[%s5] sm:$0xf]
        %v984 = vld [vmem:[%s5 + $0x4] sm:$0xf]
        %v985 = vld [vmem:[%s5 + $0x8] sm:$0xf]
        %v986 = vld [vmem:[%s5 + $0xc] sm:$0xf]
        %v987 = vld [vmem:[%s5 + $0x10] sm:$0xf]
        %v988 = vld [vmem:[%s5 + $0x14] sm:$0xf]
        %v989 = vld [vmem:[%s5 + $0x18] sm:$0xf]
        %v990 = vld [vmem:[%s5 + $0x1c] sm:$0xf]
        %v991 = vld [vmem:[%s5 + $0x20] sm:$0xf]
        %v992 = vld [vmem:[%s5 + $0x24] sm:$0xf]
        %v993 = vld [vmem:[%s5 + $0x28] sm:$0xf]
        %v994 = vld [vmem:[%s5 + $0x2c] sm:$0xf]
        %v995 = vld [vmem:[%s5 + $0x30] sm:$0xf]
        %v996 = vld [vmem:[%s5 + $0x34] sm:$0xf]
        %v997 = vld [vmem:[%s5 + $0x38] sm:$0xf]
        %v998 = vld [vmem:[%s5 + $0x3c] sm:$0xf]
        %v999 = vld [vmem:[%s5 + $0x40] sm:$0xf]
        %v1000 = vld [vmem:[%s5 + $0x44] sm:$0xf]
        %v1001 = vld [vmem:[%s5 + $0x48] sm:$0xf]
        %v1002 = vld [vmem:[%s5 + $0x4c] sm:$0xf]
        %v1003 = vld [vmem:[%s5 + $0x50] sm:$0xf]
        %v1004 = vld [vmem:[%s5 + $0x54] sm:$0xf]
        %v1005 = vld [vmem:[%s5 + $0x58] sm:$0xf]
        %v1006 = vld [vmem:[%s5 + $0x5c] sm:$0xf]
        %v1007 = vld [vmem:[%s6] sm:$0x1]
        %v1009 = vlaneseq
        %v1010 = vshrl.u32 %v1009, 7
        %v1011 = vsub.s32 0, %v1010
        %v1012 = vrot.slane %v1007, %v1011
        %v1038 = vunpack.c.l.b16 %v983
        %v1039 = vunpack.c.l.b16 %v984
        %v1040 = vunpack.c.l.b16 %v985
        %v1041 = vunpack.c.l.b16 %v986
        %v1042 = vunpack.c.l.b16 %v987
        %v1043 = vunpack.c.l.b16 %v988
        %v1044 = vunpack.c.l.b16 %v989
        %v1045 = vunpack.c.l.b16 %v990
        %v1046 = vunpack.c.l.b16 %v991
        %v1047 = vunpack.c.l.b16 %v992
        %v1048 = vunpack.c.l.b16 %v993
        %v1049 = vunpack.c.l.b16 %v994
        %v1050 = vunpack.c.l.b16 %v995
        %v1051 = vunpack.c.l.b16 %v996
        %v1052 = vunpack.c.l.b16 %v997
        %v1053 = vunpack.c.l.b16 %v998
        %v1054 = vunpack.c.l.b16 %v999
        %v1055 = vunpack.c.l.b16 %v1000
        %v1056 = vunpack.c.l.b16 %v1001
        %v1057 = vunpack.c.l.b16 %v1002
        %v1058 = vunpack.c.l.b16 %v1003
        %v1059 = vunpack.c.l.b16 %v1004
        %v1060 = vunpack.c.l.b16 %v1005
        %v1061 = vunpack.c.l.b16 %v1006
        %v1062 = vpack.c.b16 %v1039, %v1038
        %v1063 = vpack.c.b16 %v1041, %v1040
        %v1064 = vpack.c.b16 %v1043, %v1042
        %v1065 = vpack.c.b16 %v1045, %v1044
        %v1066 = vpack.c.b16 %v1047, %v1046
        %v1067 = vpack.c.b16 %v1049, %v1048
        %v1068 = vpack.c.b16 %v1051, %v1050
        %v1069 = vpack.c.b16 %v1053, %v1052
        %v1070 = vpack.c.b16 %v1055, %v1054
        %v1071 = vpack.c.b16 %v1057, %v1056
        %v1072 = vpack.c.b16 %v1059, %v1058
        %v1073 = vpack.c.b16 %v1061, %v1060
        %v1087 = vsel %vm819, %v982, 0
        %1089 = vmatprep.subr.bf16.mxu0 0
        %1090 = vmatpush1.bf16.msra.mxu0 %v1062
        %1091 = vmatprep.subr.bf16.mxu0 0
        %1092 = vmatpush1.bf16.msra.mxu0 %v1063
        %1093 = vmatprep.subr.bf16.mxu0 0
        %1094 = vmatpush1.bf16.msra.mxu0 %v1064
        %1095 = vmatprep.subr.bf16.mxu0 0
        %1096 = vmatpush1.bf16.msra.mxu0 %v1065
        %1097 = vmatprep.subr.bf16.mxu0 0
        %1098 = vmatpush1.bf16.msra.mxu0 %v1066
        %1099 = vmatprep.subr.bf16.mxu0 0
        %1100 = vmatpush1.bf16.msra.mxu0 %v1067
        %1101 = vmatprep.subr.bf16.mxu0 0
        %1102 = vmatpush1.bf16.msra.mxu0 %v1068
        %1103 = vmatprep.subr.bf16.mxu0 0
        %1104 = vmatpush1.bf16.msra.mxu0 %v1069
        %1105 = vmatprep.subr.bf16.mxu0 0
        %1106 = vmatpush1.bf16.msra.mxu0 %v1070
        %1107 = vmatprep.subr.bf16.mxu0 0
        %1108 = vmatpush1.bf16.msra.mxu0 %v1071
        %1109 = vmatprep.subr.bf16.mxu0 0
        %1110 = vmatpush1.bf16.msra.mxu0 %v1072
        %1111 = vmatprep.subr.bf16.mxu0 0
        %1112 = vmatpush1.bf16.msra.mxu0 %v1073
        %1113 = vmatprep.subr.bf16.mxu0 0
        %1114 = vmatpush1.bf16.msra.mxu0 0
        %1115 = vmatprep.subr.bf16.mxu0 0
        %1116 = vmatpush1.bf16.msra.mxu0 0
        %1117 = vmatprep.subr.bf16.mxu0 0
        %1118 = vmatpush1.bf16.msra.mxu0 0
        %1119 = vmatprep.subr.bf16.mxu0 0
        %1120 = vmatpush1.bf16.msra.mxu0 0
        %1121 = vmatprep.mubr.bf16.mxu0 %v1087
        %1122 = vmatmul.mubr.bf16.gmra.mrb[0].mxu0 %v981
        %v1123 = vpop.f32.mrb[0].mxu0
        %v1124 = vadd.f32 %v1012, %v1123
        %v1125 = vpop.f32.mrb[0].mxu0
        %v1126 = vpop.f32.mrb[0].mxu0
        %v1127 = vpop.f32.mrb[0].mxu0
        %1128 = vdwg.mxu0
        %v1129 = vmax.f32 %v1124, 0.0
        %v1131 = vrot.slane %v1129, 7
        %v1133 = vsel %vm728, 0.0, %v1131
        %v1134 = vrot.slane %v1129, 1
        %v1136 = vsel %vm732, %v1134, 0.0
        %1137 = vrot.lane.b32.xlu0 %v1129, 64
        %v1138 = vpop.permute.xlu0 %1137
        %v1140 = vsel %vm819, %v1133, %v1138
        %v1141 = vpack.c.bf16 %v1140, %v1140
        %v1142 = vpack.c.bf16 %v1136, %v1136
        %v1143 = vld [vmem:[#allocation8] sm:$0xf]
        %v1144 = vld [vmem:[#allocation8 + $0x4] sm:$0xf]
        %v1145 = vld [vmem:[#allocation8 + $0x8] sm:$0xf]
        %v1146 = vld [vmem:[#allocation8 + $0xc] sm:$0xf]
        %v1147 = vld [vmem:[#allocation8 + $0x10] sm:$0xf]
        %v1148 = vld [vmem:[#allocation8 + $0x14] sm:$0xf]
        %v1149 = vld [vmem:[#allocation8 + $0x18] sm:$0xf]
        %v1150 = vld [vmem:[#allocation8 + $0x1c] sm:$0xf]
        %v1151 = vld [vmem:[#allocation8 + $0x20] sm:$0xf]
        %v1152 = vld [vmem:[#allocation8 + $0x24] sm:$0xf]
        %v1153 = vld [vmem:[#allocation8 + $0x28] sm:$0xf]
        %v1154 = vld [vmem:[#allocation8 + $0x2c] sm:$0xf]
        %v1155 = vld [vmem:[#allocation8 + $0x30] sm:$0xf]
        %v1156 = vld [vmem:[#allocation8 + $0x34] sm:$0xf]
        %v1157 = vld [vmem:[#allocation8 + $0x38] sm:$0xf]
        %v1158 = vld [vmem:[#allocation8 + $0x3c] sm:$0xf]
        %v1159 = vld [vmem:[#allocation8 + $0x40] sm:$0xf]
        %v1160 = vld [vmem:[#allocation8 + $0x44] sm:$0xf]
        %v1161 = vld [vmem:[#allocation8 + $0x48] sm:$0xf]
        %v1162 = vld [vmem:[#allocation8 + $0x4c] sm:$0xf]
        %v1163 = vld [vmem:[#allocation8 + $0x50] sm:$0xf]
        %v1164 = vld [vmem:[#allocation8 + $0x54] sm:$0xf]
        %v1165 = vld [vmem:[#allocation8 + $0x58] sm:$0xf]
        %v1166 = vld [vmem:[#allocation8 + $0x5c] sm:$0xf]
        %v1167 = vld [vmem:[%s8] sm:$0x1]
        %v1169 = vlaneseq
        %v1170 = vshrl.u32 %v1169, 7
        %v1171 = vsub.s32 0, %v1170
        %v1172 = vrot.slane %v1167, %v1171
        %v1198 = vunpack.c.l.b16 %v1143
        %v1199 = vunpack.c.l.b16 %v1144
        %v1200 = vunpack.c.l.b16 %v1145
        %v1201 = vunpack.c.l.b16 %v1146
        %v1202 = vunpack.c.l.b16 %v1147
        %v1203 = vunpack.c.l.b16 %v1148
        %v1204 = vunpack.c.l.b16 %v1149
        %v1205 = vunpack.c.l.b16 %v1150
        %v1206 = vunpack.c.l.b16 %v1151
        %v1207 = vunpack.c.l.b16 %v1152
        %v1208 = vunpack.c.l.b16 %v1153
        %v1209 = vunpack.c.l.b16 %v1154
        %v1210 = vunpack.c.l.b16 %v1155
        %v1211 = vunpack.c.l.b16 %v1156
        %v1212 = vunpack.c.l.b16 %v1157
        %v1213 = vunpack.c.l.b16 %v1158
        %v1214 = vunpack.c.l.b16 %v1159
        %v1215 = vunpack.c.l.b16 %v1160
        %v1216 = vunpack.c.l.b16 %v1161
        %v1217 = vunpack.c.l.b16 %v1162
        %v1218 = vunpack.c.l.b16 %v1163
        %v1219 = vunpack.c.l.b16 %v1164
        %v1220 = vunpack.c.l.b16 %v1165
        %v1221 = vunpack.c.l.b16 %v1166
        %v1222 = vpack.c.b16 %v1199, %v1198
        %v1223 = vpack.c.b16 %v1201, %v1200
        %v1224 = vpack.c.b16 %v1203, %v1202
        %v1225 = vpack.c.b16 %v1205, %v1204
        %v1226 = vpack.c.b16 %v1207, %v1206
        %v1227 = vpack.c.b16 %v1209, %v1208
        %v1228 = vpack.c.b16 %v1211, %v1210
        %v1229 = vpack.c.b16 %v1213, %v1212
        %v1230 = vpack.c.b16 %v1215, %v1214
        %v1231 = vpack.c.b16 %v1217, %v1216
        %v1232 = vpack.c.b16 %v1219, %v1218
        %v1233 = vpack.c.b16 %v1221, %v1220
        %v1247 = vsel %vm819, %v1142, 0
        %1249 = vmatprep.subr.bf16.mxu0 0
        %1250 = vmatpush1.bf16.msra.mxu0 %v1222
        %1251 = vmatprep.subr.bf16.mxu0 0
        %1252 = vmatpush1.bf16.msra.mxu0 %v1223
        %1253 = vmatprep.subr.bf16.mxu0 0
        %1254 = vmatpush1.bf16.msra.mxu0 %v1224
        %1255 = vmatprep.subr.bf16.mxu0 0
        %1256 = vmatpush1.bf16.msra.mxu0 %v1225
        %1257 = vmatprep.subr.bf16.mxu0 0
        %1258 = vmatpush1.bf16.msra.mxu0 %v1226
        %1259 = vmatprep.subr.bf16.mxu0 0
        %1260 = vmatpush1.bf16.msra.mxu0 %v1227
        %1261 = vmatprep.subr.bf16.mxu0 0
        %1262 = vmatpush1.bf16.msra.mxu0 %v1228
        %1263 = vmatprep.subr.bf16.mxu0 0
        %1264 = vmatpush1.bf16.msra.mxu0 %v1229
        %1265 = vmatprep.subr.bf16.mxu0 0
        %1266 = vmatpush1.bf16.msra.mxu0 %v1230
        %1267 = vmatprep.subr.bf16.mxu0 0
        %1268 = vmatpush1.bf16.msra.mxu0 %v1231
        %1269 = vmatprep.subr.bf16.mxu0 0
        %1270 = vmatpush1.bf16.msra.mxu0 %v1232
        %1271 = vmatprep.subr.bf16.mxu0 0
        %1272 = vmatpush1.bf16.msra.mxu0 %v1233
        %1273 = vmatprep.subr.bf16.mxu0 0
        %1274 = vmatpush1.bf16.msra.mxu0 0
        %1275 = vmatprep.subr.bf16.mxu0 0
        %1276 = vmatpush1.bf16.msra.mxu0 0
        %1277 = vmatprep.subr.bf16.mxu0 0
        %1278 = vmatpush1.bf16.msra.mxu0 0
        %1279 = vmatprep.subr.bf16.mxu0 0
        %1280 = vmatpush1.bf16.msra.mxu0 0
        %1281 = vmatprep.mubr.bf16.mxu0 %v1247
        %1282 = vmatmul.mubr.bf16.gmra.mrb[0].mxu0 %v1141
        %v1283 = vpop.f32.mrb[0].mxu0
        %v1284 = vadd.f32 %v1172, %v1283
        %v1285 = vpop.f32.mrb[0].mxu0
        %v1286 = vpop.f32.mrb[0].mxu0
        %v1287 = vpop.f32.mrb[0].mxu0
        %1288 = vdwg.mxu0
        %v1289 = vmax.f32 %v1284, 0.0
        %v1290 = vpack.c.bf16 %v1289, %v1289
        %v1291 = vld [vmem:[%s9] sm:$0xff]
        %v1292 = vld [vmem:[%s9 + $0x8] sm:$0xff]
        %v1293 = vld [vmem:[%s9 + $0x10] sm:$0xff]
        %v1294 = vld [vmem:[%s9 + $0x18] sm:$0xff]
        %v1295 = vld [vmem:[%s9 + $0x20] sm:$0xff]
        %v1296 = vld [vmem:[%s9 + $0x28] sm:$0xff]
        %v1297 = vld [vmem:[%s9 + $0x30] sm:$0xff]
        %v1298 = vld [vmem:[%s9 + $0x38] sm:$0xff]
        %v1299 = vld [vmem:[%s9 + $0x40] sm:$0xff]
        %v1300 = vld [vmem:[%s9 + $0x48] sm:$0xff]
        %v1301 = vld [vmem:[%s9 + $0x50] sm:$0xff]
        %v1302 = vld [vmem:[%s9 + $0x58] sm:$0xff]
        %v1303 = vld [vmem:[%s9 + $0x60] sm:$0xff]
        %v1304 = vld [vmem:[%s9 + $0x68] sm:$0xff]
        %v1305 = vld [vmem:[%s9 + $0x70] sm:$0xff]
        %v1306 = vld [vmem:[%s9 + $0x78] sm:$0xff]
        %v1307 = vld [vmem:[%s9 + $0x80] sm:$0xff]
        %v1308 = vld [vmem:[%s9 + $0x88] sm:$0xff]
        %v1309 = vld [vmem:[%s9 + $0x90] sm:$0xff]
        %v1310 = vld [vmem:[%s9 + $0x98] sm:$0xff]
        %v1311 = vld [vmem:[%s9 + $0xa0] sm:$0xff]
        %v1312 = vld [vmem:[%s9 + $0xa8] sm:$0xff]
        %v1313 = vld [vmem:[%s9 + $0xb0] sm:$0xff]
        %v1314 = vld [vmem:[%s9 + $0xb8] sm:$0xff]
        %v1315 = vld [vmem:[%s9 + $0xc0] sm:$0xff]
        %v1316 = vld [vmem:[%s9 + $0xc8] sm:$0xff]
        %v1317 = vld [vmem:[%s9 + $0xd0] sm:$0xff]
        %v1318 = vld [vmem:[%s9 + $0xd8] sm:$0xff]
        %v1319 = vld [vmem:[%s9 + $0xe0] sm:$0xff]
        %v1320 = vld [vmem:[%s9 + $0xe8] sm:$0xff]
        %v1321 = vld [vmem:[%s9 + $0xf0] sm:$0xff]
        %v1322 = vld [vmem:[%s9 + $0xf8] sm:$0xff]
        %v1323 = vld [vmem:[%s11] sm:$0xf]
        %v1325 = vlaneseq
        %v1326 = vshrl.u32 %v1325, 7
        %v1327 = vsub.s32 0, %v1326
        %v1328 = vrot.slane %v1323, %v1327
        %v1329 = vlaneseq
        %v1330 = vshrl.u32 %v1329, 7
        %v1331 = vsub.s32 1, %v1330
        %v1332 = vrot.slane %v1323, %v1331
        %v1333 = vlaneseq
        %v1334 = vshrl.u32 %v1333, 7
        %v1335 = vsub.s32 2, %v1334
        %v1336 = vrot.slane %v1323, %v1335
        %v1337 = vlaneseq
        %v1338 = vshrl.u32 %v1337, 7
        %v1339 = vsub.s32 3, %v1338
        %v1340 = vrot.slane %v1323, %v1339
        %v1377 = vunpack.c.l.b16 %v1291
        %v1378 = vunpack.c.h.b16 %v1291
        %v1379 = vunpack.c.l.b16 %v1292
        %v1380 = vunpack.c.h.b16 %v1292
        %v1381 = vunpack.c.l.b16 %v1293
        %v1382 = vunpack.c.h.b16 %v1293
        %v1383 = vunpack.c.l.b16 %v1294
        %v1384 = vunpack.c.h.b16 %v1294
        %v1385 = vunpack.c.l.b16 %v1295
        %v1386 = vunpack.c.h.b16 %v1295
        %v1387 = vunpack.c.l.b16 %v1296
        %v1388 = vunpack.c.h.b16 %v1296
        %v1389 = vunpack.c.l.b16 %v1297
        %v1390 = vunpack.c.h.b16 %v1297
        %v1391 = vunpack.c.l.b16 %v1298
        %v1392 = vunpack.c.h.b16 %v1298
        %v1393 = vunpack.c.l.b16 %v1299
        %v1394 = vunpack.c.h.b16 %v1299
        %v1395 = vunpack.c.l.b16 %v1300
        %v1396 = vunpack.c.h.b16 %v1300
        %v1397 = vunpack.c.l.b16 %v1301
        %v1398 = vunpack.c.h.b16 %v1301
        %v1399 = vunpack.c.l.b16 %v1302
        %v1400 = vunpack.c.h.b16 %v1302
        %v1401 = vunpack.c.l.b16 %v1303
        %v1402 = vunpack.c.h.b16 %v1303
        %v1403 = vunpack.c.l.b16 %v1304
        %v1404 = vunpack.c.h.b16 %v1304
        %v1405 = vunpack.c.l.b16 %v1305
        %v1406 = vunpack.c.h.b16 %v1305
        %v1407 = vunpack.c.l.b16 %v1306
        %v1408 = vunpack.c.h.b16 %v1306
        %v1409 = vunpack.c.l.b16 %v1307
        %v1410 = vunpack.c.h.b16 %v1307
        %v1411 = vunpack.c.l.b16 %v1308
        %v1412 = vunpack.c.h.b16 %v1308
        %v1413 = vunpack.c.l.b16 %v1309
        %v1414 = vunpack.c.h.b16 %v1309
        %v1415 = vunpack.c.l.b16 %v1310
        %v1416 = vunpack.c.h.b16 %v1310
        %v1417 = vunpack.c.l.b16 %v1311
        %v1418 = vunpack.c.h.b16 %v1311
        %v1419 = vunpack.c.l.b16 %v1312
        %v1420 = vunpack.c.h.b16 %v1312
        %v1421 = vunpack.c.l.b16 %v1313
        %v1422 = vunpack.c.h.b16 %v1313
        %v1423 = vunpack.c.l.b16 %v1314
        %v1424 = vunpack.c.h.b16 %v1314
        %v1425 = vunpack.c.l.b16 %v1315
        %v1426 = vunpack.c.h.b16 %v1315
        %v1427 = vunpack.c.l.b16 %v1316
        %v1428 = vunpack.c.h.b16 %v1316
        %v1429 = vunpack.c.l.b16 %v1317
        %v1430 = vunpack.c.h.b16 %v1317
        %v1431 = vunpack.c.l.b16 %v1318
        %v1432 = vunpack.c.h.b16 %v1318
        %v1433 = vunpack.c.l.b16 %v1319
        %v1434 = vunpack.c.h.b16 %v1319
        %v1435 = vunpack.c.l.b16 %v1320
        %v1436 = vunpack.c.h.b16 %v1320
        %v1437 = vunpack.c.l.b16 %v1321
        %v1438 = vunpack.c.h.b16 %v1321
        %v1439 = vunpack.c.l.b16 %v1322
        %v1440 = vunpack.c.h.b16 %v1322
        %v1441 = vpack.c.b16 %v1381, %v1377
        %v1442 = vpack.c.b16 %v1382, %v1378
        %v1443 = vpack.c.b16 %v1383, %v1379
        %v1444 = vpack.c.b16 %v1384, %v1380
        %v1445 = vpack.c.b16 %v1389, %v1385
        %v1446 = vpack.c.b16 %v1390, %v1386
        %v1447 = vpack.c.b16 %v1391, %v1387
        %v1448 = vpack.c.b16 %v1392, %v1388
        %v1449 = vpack.c.b16 %v1397, %v1393
        %v1450 = vpack.c.b16 %v1398, %v1394
        %v1451 = vpack.c.b16 %v1399, %v1395
        %v1452 = vpack.c.b16 %v1400, %v1396
        %v1453 = vpack.c.b16 %v1405, %v1401
        %v1454 = vpack.c.b16 %v1406, %v1402
        %v1455 = vpack.c.b16 %v1407, %v1403
        %v1456 = vpack.c.b16 %v1408, %v1404
        %v1457 = vpack.c.b16 %v1413, %v1409
        %v1458 = vpack.c.b16 %v1414, %v1410
        %v1459 = vpack.c.b16 %v1415, %v1411
        %v1460 = vpack.c.b16 %v1416, %v1412
        %v1461 = vpack.c.b16 %v1421, %v1417
        %v1462 = vpack.c.b16 %v1422, %v1418
        %v1463 = vpack.c.b16 %v1423, %v1419
        %v1464 = vpack.c.b16 %v1424, %v1420
        %v1465 = vpack.c.b16 %v1429, %v1425
        %v1466 = vpack.c.b16 %v1430, %v1426
        %v1467 = vpack.c.b16 %v1431, %v1427
        %v1468 = vpack.c.b16 %v1432, %v1428
        %v1469 = vpack.c.b16 %v1437, %v1433
        %v1470 = vpack.c.b16 %v1438, %v1434
        %v1471 = vpack.c.b16 %v1439, %v1435
        %v1472 = vpack.c.b16 %v1440, %v1436
        %1505 = vmatprep.subr.bf16.mxu0 %v1442
        %1506 = vmatpush1.bf16.msra.mxu0 %v1441
        %1507 = vmatprep.subr.bf16.mxu0 %v1446
        %1508 = vmatpush1.bf16.msra.mxu0 %v1445
        %1509 = vmatprep.subr.bf16.mxu0 %v1450
        %1510 = vmatpush1.bf16.msra.mxu0 %v1449
        %1511 = vmatprep.subr.bf16.mxu0 %v1454
        %1512 = vmatpush1.bf16.msra.mxu0 %v1453
        %1513 = vmatprep.subr.bf16.mxu0 %v1458
        %1514 = vmatpush1.bf16.msra.mxu0 %v1457
        %1515 = vmatprep.subr.bf16.mxu0 %v1462
        %1516 = vmatpush1.bf16.msra.mxu0 %v1461
        %1517 = vmatprep.subr.bf16.mxu0 %v1466
        %1518 = vmatpush1.bf16.msra.mxu0 %v1465
        %1519 = vmatprep.subr.bf16.mxu0 %v1470
        %1520 = vmatpush1.bf16.msra.mxu0 %v1469
        %1521 = vmatprep.subr.bf16.mxu0 0
        %1522 = vmatpush1.bf16.msra.mxu0 0
        %1523 = vmatprep.subr.bf16.mxu0 0
        %1524 = vmatpush1.bf16.msra.mxu0 0
        %1525 = vmatprep.subr.bf16.mxu0 0
        %1526 = vmatpush1.bf16.msra.mxu0 0
        %1527 = vmatprep.subr.bf16.mxu0 0
        %1528 = vmatpush1.bf16.msra.mxu0 0
        %1529 = vmatprep.subr.bf16.mxu0 0
        %1530 = vmatpush1.bf16.msra.mxu0 0
        %1531 = vmatprep.subr.bf16.mxu0 0
        %1532 = vmatpush1.bf16.msra.mxu0 0
        %1533 = vmatprep.subr.bf16.mxu0 0
        %1534 = vmatpush1.bf16.msra.mxu0 0
        %1535 = vmatprep.subr.bf16.mxu0 0
        %1536 = vmatpush1.bf16.msra.mxu0 0
        %1537 = vmatprep.mubr.bf16.mxu0 0
        %1538 = vmatmul.mubr.bf16.gmra.mrb[0].mxu0 %v1290
        %v1539 = vpop.f32.mrb[0].mxu0
        %v1540 = vadd.f32 %v1328, %v1539
        %v1541 = vpop.f32.mrb[0].mxu0
        %v1542 = vadd.f32 %v1332, %v1541
        %v1543 = vpop.f32.mrb[0].mxu0
        %v1544 = vpop.f32.mrb[0].mxu0
        %1545 = vdwg.mxu0
        %1546 = vmatprep.subr.bf16.mxu0 %v1444
        %1547 = vmatpush1.bf16.msra.mxu0 %v1443
        %1548 = vmatprep.subr.bf16.mxu0 %v1448
        %1549 = vmatpush1.bf16.msra.mxu0 %v1447
        %1550 = vmatprep.subr.bf16.mxu0 %v1452
        %1551 = vmatpush1.bf16.msra.mxu0 %v1451
        %1552 = vmatprep.subr.bf16.mxu0 %v1456
        %1553 = vmatpush1.bf16.msra.mxu0 %v1455
        %1554 = vmatprep.subr.bf16.mxu0 %v1460
        %1555 = vmatpush1.bf16.msra.mxu0 %v1459
        %1556 = vmatprep.subr.bf16.mxu0 %v1464
        %1557 = vmatpush1.bf16.msra.mxu0 %v1463
        %1558 = vmatprep.subr.bf16.mxu0 %v1468
        %1559 = vmatpush1.bf16.msra.mxu0 %v1467
        %1560 = vmatprep.subr.bf16.mxu0 %v1472
        %1561 = vmatpush1.bf16.msra.mxu0 %v1471
        %1562 = vmatprep.subr.bf16.mxu0 0
        %1563 = vmatpush1.bf16.msra.mxu0 0
        %1564 = vmatprep.subr.bf16.mxu0 0
        %1565 = vmatpush1.bf16.msra.mxu0 0
        %1566 = vmatprep.subr.bf16.mxu0 0
        %1567 = vmatpush1.bf16.msra.mxu0 0
        %1568 = vmatprep.subr.bf16.mxu0 0
        %1569 = vmatpush1.bf16.msra.mxu0 0
        %1570 = vmatprep.subr.bf16.mxu0 0
        %1571 = vmatpush1.bf16.msra.mxu0 0
        %1572 = vmatprep.subr.bf16.mxu0 0
        %1573 = vmatpush1.bf16.msra.mxu0 0
        %1574 = vmatprep.subr.bf16.mxu0 0
        %1575 = vmatpush1.bf16.msra.mxu0 0
        %1576 = vmatprep.subr.bf16.mxu0 0
        %1577 = vmatpush1.bf16.msra.mxu0 0
        %1578 = vmatprep.mubr.bf16.mxu0 0
        %1579 = vmatmul.mubr.bf16.gmra.mrb[0].mxu0 %v1290
        %v1580 = vpop.f32.mrb[0].mxu0
        %v1581 = vadd.f32 %v1336, %v1580
        %v1582 = vpop.f32.mrb[0].mxu0
        %v1583 = vadd.f32 %v1340, %v1582
        %v1584 = vpop.f32.mrb[0].mxu0
        %v1585 = vpop.f32.mrb[0].mxu0
        %1586 = vdwg.mxu0
        %1587 = vst [vmem:[#allocation2] sm:$0xff] %v1540
        %1588 = vst [vmem:[#allocation2 + $0x8] sm:$0xff] %v1542
        %1589 = vst [vmem:[#allocation2 + $0x10] sm:$0xff] %v1581
        %1590 = vst [vmem:[#allocation2 + $0x18] sm:$0xff] %v1583
        loop: start=0, step=1, limit=8
        $region125: #{cnn_lstm_hybrid_forward.1} parent=103 // loop_pre_header
          _
        $region126: #{cnn_lstm_hybrid_forward.1} parent=103 // loop_header
          %s1592 = sphi 0, %s1596
          %p1593 = scmp.ge.s32.totalorder %s1592, 8
          %v1597 = vphi 0.0, %v1945
          %v1598 = vphi 0.0, %v1943
          %v1599 = vphi 0.0, %v2545
          %v1600 = vphi 0.0, %v2543
        $region127: #{cnn_lstm_hybrid_forward.1} parent=103 // loop_header_branch
          %1595 = sbr.rel (%p1593) target = $region131
        $region128: #{cnn_lstm_hybrid_forward.1} parent=103 // loop_body
          %s1601 = sshra.s32 %s1592, 3
          %s1602 = sand.u32 %s1592, 7
          %s1603 = sshra.s32 %s1592, 3
          %s1604 = sand.u32 %s1592, 7
          %s1605 = smul.u32 %s1601, 4
          %s1606 = smul.u32 %s1605, 8
          %s1607 = sadd.s32 %s1606, %s1604
          %s1608 = scalar_lea.vmem [#allocation2], %s1607
          %v1609 = vld [vmem:[%s1608] ss:$8 sm:$0xf]
          %v1610 = vpack.c.bf16 %v1597, %v1597
          %v1611 = vld [vmem:[%s10] sm:$0xff]
          %v1612 = vld [vmem:[%s10 + $0x8] sm:$0xff]
          %v1613 = vld [vmem:[%s10 + $0x10] sm:$0xff]
          %v1614 = vld [vmem:[%s10 + $0x18] sm:$0xff]
          %v1615 = vld [vmem:[%s10 + $0x20] sm:$0xff]
          %v1616 = vld [vmem:[%s10 + $0x28] sm:$0xff]
          %v1617 = vld [vmem:[%s10 + $0x30] sm:$0xff]
          %v1618 = vld [vmem:[%s10 + $0x38] sm:$0xff]
          %v1619 = vld [vmem:[%s10 + $0x40] sm:$0xff]
          %v1620 = vld [vmem:[%s10 + $0x48] sm:$0xff]
          %v1621 = vld [vmem:[%s10 + $0x50] sm:$0xff]
          %v1622 = vld [vmem:[%s10 + $0x58] sm:$0xff]
          %v1623 = vld [vmem:[%s10 + $0x60] sm:$0xff]
          %v1624 = vld [vmem:[%s10 + $0x68] sm:$0xff]
          %v1625 = vld [vmem:[%s10 + $0x70] sm:$0xff]
          %v1626 = vld [vmem:[%s10 + $0x78] sm:$0xff]
          %v1627 = vld [vmem:[%s10 + $0x80] sm:$0xff]
          %v1628 = vld [vmem:[%s10 + $0x88] sm:$0xff]
          %v1629 = vld [vmem:[%s10 + $0x90] sm:$0xff]
          %v1630 = vld [vmem:[%s10 + $0x98] sm:$0xff]
          %v1631 = vld [vmem:[%s10 + $0xa0] sm:$0xff]
          %v1632 = vld [vmem:[%s10 + $0xa8] sm:$0xff]
          %v1633 = vld [vmem:[%s10 + $0xb0] sm:$0xff]
          %v1634 = vld [vmem:[%s10 + $0xb8] sm:$0xff]
          %v1635 = vld [vmem:[%s10 + $0xc0] sm:$0xff]
          %v1636 = vld [vmem:[%s10 + $0xc8] sm:$0xff]
          %v1637 = vld [vmem:[%s10 + $0xd0] sm:$0xff]
          %v1638 = vld [vmem:[%s10 + $0xd8] sm:$0xff]
          %v1639 = vld [vmem:[%s10 + $0xe0] sm:$0xff]
          %v1640 = vld [vmem:[%s10 + $0xe8] sm:$0xff]
          %v1641 = vld [vmem:[%s10 + $0xf0] sm:$0xff]
          %v1642 = vld [vmem:[%s10 + $0xf8] sm:$0xff]
          %v1675 = vunpack.c.l.b16 %v1611
          %v1676 = vunpack.c.h.b16 %v1611
          %v1677 = vunpack.c.l.b16 %v1612
          %v1678 = vunpack.c.h.b16 %v1612
          %v1679 = vunpack.c.l.b16 %v1613
          %v1680 = vunpack.c.h.b16 %v1613
          %v1681 = vunpack.c.l.b16 %v1614
          %v1682 = vunpack.c.h.b16 %v1614
          %v1683 = vunpack.c.l.b16 %v1615
          %v1684 = vunpack.c.h.b16 %v1615
          %v1685 = vunpack.c.l.b16 %v1616
          %v1686 = vunpack.c.h.b16 %v1616
          %v1687 = vunpack.c.l.b16 %v1617
          %v1688 = vunpack.c.h.b16 %v1617
          %v1689 = vunpack.c.l.b16 %v1618
          %v1690 = vunpack.c.h.b16 %v1618
          %v1691 = vunpack.c.l.b16 %v1619
          %v1692 = vunpack.c.h.b16 %v1619
          %v1693 = vunpack.c.l.b16 %v1620
          %v1694 = vunpack.c.h.b16 %v1620
          %v1695 = vunpack.c.l.b16 %v1621
          %v1696 = vunpack.c.h.b16 %v1621
          %v1697 = vunpack.c.l.b16 %v1622
          %v1698 = vunpack.c.h.b16 %v1622
          %v1699 = vunpack.c.l.b16 %v1623
          %v1700 = vunpack.c.h.b16 %v1623
          %v1701 = vunpack.c.l.b16 %v1624
          %v1702 = vunpack.c.h.b16 %v1624
          %v1703 = vunpack.c.l.b16 %v1625
          %v1704 = vunpack.c.h.b16 %v1625
          %v1705 = vunpack.c.l.b16 %v1626
          %v1706 = vunpack.c.h.b16 %v1626
          %v1707 = vunpack.c.l.b16 %v1627
          %v1708 = vunpack.c.h.b16 %v1627
          %v1709 = vunpack.c.l.b16 %v1628
          %v1710 = vunpack.c.h.b16 %v1628
          %v1711 = vunpack.c.l.b16 %v1629
          %v1712 = vunpack.c.h.b16 %v1629
          %v1713 = vunpack.c.l.b16 %v1630
          %v1714 = vunpack.c.h.b16 %v1630
          %v1715 = vunpack.c.l.b16 %v1631
          %v1716 = vunpack.c.h.b16 %v1631
          %v1717 = vunpack.c.l.b16 %v1632
          %v1718 = vunpack.c.h.b16 %v1632
          %v1719 = vunpack.c.l.b16 %v1633
          %v1720 = vunpack.c.h.b16 %v1633
          %v1721 = vunpack.c.l.b16 %v1634
          %v1722 = vunpack.c.h.b16 %v1634
          %v1723 = vunpack.c.l.b16 %v1635
          %v1724 = vunpack.c.h.b16 %v1635
          %v1725 = vunpack.c.l.b16 %v1636
          %v1726 = vunpack.c.h.b16 %v1636
          %v1727 = vunpack.c.l.b16 %v1637
          %v1728 = vunpack.c.h.b16 %v1637
          %v1729 = vunpack.c.l.b16 %v1638
          %v1730 = vunpack.c.h.b16 %v1638
          %v1731 = vunpack.c.l.b16 %v1639
          %v1732 = vunpack.c.h.b16 %v1639
          %v1733 = vunpack.c.l.b16 %v1640
          %v1734 = vunpack.c.h.b16 %v1640
          %v1735 = vunpack.c.l.b16 %v1641
          %v1736 = vunpack.c.h.b16 %v1641
          %v1737 = vunpack.c.l.b16 %v1642
          %v1738 = vunpack.c.h.b16 %v1642
          %v1739 = vpack.c.b16 %v1679, %v1675
          %v1740 = vpack.c.b16 %v1680, %v1676
          %v1741 = vpack.c.b16 %v1681, %v1677
          %v1742 = vpack.c.b16 %v1682, %v1678
          %v1743 = vpack.c.b16 %v1687, %v1683
          %v1744 = vpack.c.b16 %v1688, %v1684
          %v1745 = vpack.c.b16 %v1689, %v1685
          %v1746 = vpack.c.b16 %v1690, %v1686
          %v1747 = vpack.c.b16 %v1695, %v1691
          %v1748 = vpack.c.b16 %v1696, %v1692
          %v1749 = vpack.c.b16 %v1697, %v1693
          %v1750 = vpack.c.b16 %v1698, %v1694
          %v1751 = vpack.c.b16 %v1703, %v1699
          %v1752 = vpack.c.b16 %v1704, %v1700
          %v1753 = vpack.c.b16 %v1705, %v1701
          %v1754 = vpack.c.b16 %v1706, %v1702
          %v1755 = vpack.c.b16 %v1711, %v1707
          %v1756 = vpack.c.b16 %v1712, %v1708
          %v1757 = vpack.c.b16 %v1713, %v1709
          %v1758 = vpack.c.b16 %v1714, %v1710
          %v1759 = vpack.c.b16 %v1719, %v1715
          %v1760 = vpack.c.b16 %v1720, %v1716
          %v1761 = vpack.c.b16 %v1721, %v1717
          %v1762 = vpack.c.b16 %v1722, %v1718
          %v1763 = vpack.c.b16 %v1727, %v1723
          %v1764 = vpack.c.b16 %v1728, %v1724
          %v1765 = vpack.c.b16 %v1729, %v1725
          %v1766 = vpack.c.b16 %v1730, %v1726
          %v1767 = vpack.c.b16 %v1735, %v1731
          %v1768 = vpack.c.b16 %v1736, %v1732
          %v1769 = vpack.c.b16 %v1737, %v1733
          %v1770 = vpack.c.b16 %v1738, %v1734
          %1803 = vmatprep.subr.bf16.mxu0 %v1740
          %1804 = vmatpush1.bf16.msra.mxu0 %v1739
          %1805 = vmatprep.subr.bf16.mxu0 %v1744
          %1806 = vmatpush1.bf16.msra.mxu0 %v1743
          %1807 = vmatprep.subr.bf16.mxu0 %v1748
          %1808 = vmatpush1.bf16.msra.mxu0 %v1747
          %1809 = vmatprep.subr.bf16.mxu0 %v1752
          %1810 = vmatpush1.bf16.msra.mxu0 %v1751
          %1811 = vmatprep.subr.bf16.mxu0 %v1756
          %1812 = vmatpush1.bf16.msra.mxu0 %v1755
          %1813 = vmatprep.subr.bf16.mxu0 %v1760
          %1814 = vmatpush1.bf16.msra.mxu0 %v1759
          %1815 = vmatprep.subr.bf16.mxu0 %v1764
          %1816 = vmatpush1.bf16.msra.mxu0 %v1763
          %1817 = vmatprep.subr.bf16.mxu0 %v1768
          %1818 = vmatpush1.bf16.msra.mxu0 %v1767
          %1819 = vmatprep.subr.bf16.mxu0 0
          %1820 = vmatpush1.bf16.msra.mxu0 0
          %1821 = vmatprep.subr.bf16.mxu0 0
          %1822 = vmatpush1.bf16.msra.mxu0 0
          %1823 = vmatprep.subr.bf16.mxu0 0
          %1824 = vmatpush1.bf16.msra.mxu0 0
          %1825 = vmatprep.subr.bf16.mxu0 0
          %1826 = vmatpush1.bf16.msra.mxu0 0
          %1827 = vmatprep.subr.bf16.mxu0 0
          %1828 = vmatpush1.bf16.msra.mxu0 0
          %1829 = vmatprep.subr.bf16.mxu0 0
          %1830 = vmatpush1.bf16.msra.mxu0 0
          %1831 = vmatprep.subr.bf16.mxu0 0
          %1832 = vmatpush1.bf16.msra.mxu0 0
          %1833 = vmatprep.subr.bf16.mxu0 0
          %1834 = vmatpush1.bf16.msra.mxu0 0
          %1835 = vmatprep.mubr.bf16.mxu0 0
          %1836 = vmatmul.mubr.bf16.gmra.mrb[0].mxu0 %v1610
          %v1837 = vpop.f32.mrb[0].mxu0
          %v1838 = vadd.f32 0.0, %v1837
          %v1839 = vpop.f32.mrb[0].mxu0
          %v1840 = vadd.f32 0.0, %v1839
          %v1841 = vpop.f32.mrb[0].mxu0
          %v1842 = vpop.f32.mrb[0].mxu0
          %1843 = vdwg.mxu0
          %1844 = vmatprep.subr.bf16.mxu0 %v1742
          %1845 = vmatpush1.bf16.msra.mxu0 %v1741
          %1846 = vmatprep.subr.bf16.mxu0 %v1746
          %1847 = vmatpush1.bf16.msra.mxu0 %v1745
          %1848 = vmatprep.subr.bf16.mxu0 %v1750
          %1849 = vmatpush1.bf16.msra.mxu0 %v1749
          %1850 = vmatprep.subr.bf16.mxu0 %v1754
          %1851 = vmatpush1.bf16.msra.mxu0 %v1753
          %1852 = vmatprep.subr.bf16.mxu0 %v1758
          %1853 = vmatpush1.bf16.msra.mxu0 %v1757
          %1854 = vmatprep.subr.bf16.mxu0 %v1762
          %1855 = vmatpush1.bf16.msra.mxu0 %v1761
          %1856 = vmatprep.subr.bf16.mxu0 %v1766
          %1857 = vmatpush1.bf16.msra.mxu0 %v1765
          %1858 = vmatprep.subr.bf16.mxu0 %v1770
          %1859 = vmatpush1.bf16.msra.mxu0 %v1769
          %1860 = vmatprep.subr.bf16.mxu0 0
          %1861 = vmatpush1.bf16.msra.mxu0 0
          %1862 = vmatprep.subr.bf16.mxu0 0
          %1863 = vmatpush1.bf16.msra.mxu0 0
          %1864 = vmatprep.subr.bf16.mxu0 0
          %1865 = vmatpush1.bf16.msra.mxu0 0
          %1866 = vmatprep.subr.bf16.mxu0 0
          %1867 = vmatpush1.bf16.msra.mxu0 0
          %1868 = vmatprep.subr.bf16.mxu0 0
          %1869 = vmatpush1.bf16.msra.mxu0 0
          %1870 = vmatprep.subr.bf16.mxu0 0
          %1871 = vmatpush1.bf16.msra.mxu0 0
          %1872 = vmatprep.subr.bf16.mxu0 0
          %1873 = vmatpush1.bf16.msra.mxu0 0
          %1874 = vmatprep.subr.bf16.mxu0 0
          %1875 = vmatpush1.bf16.msra.mxu0 0
          %1876 = vmatprep.mubr.bf16.mxu0 0
          %1877 = vmatmul.mubr.bf16.gmra.mrb[0].mxu0 %v1610
          %v1878 = vpop.f32.mrb[0].mxu0
          %v1879 = vadd.f32 0.0, %v1878
          %v1880 = vpop.f32.mrb[0].mxu0
          %v1881 = vadd.f32 0.0, %v1880
          %v1882 = vpop.f32.mrb[0].mxu0
          %v1883 = vpop.f32.mrb[0].mxu0
          %1884 = vdwg.mxu0
          %v1889 = vcombine.low %v1838, %v1840
          %v1890 = vcombine.low %v1879, %v1881
          %v1892 = vunpack.c.l.s4 1966171168
          %v1893 = vunpack.c.0.s8 %v1892
          %v1894 = vlaneseq
          %v1895 = vshrl.u32 %v1894, 7
          %v1896 = vsub.s32 %v1893, %v1895
          %v1897 = vrot.slane %v1889, %v1896
          %v1899 = vunpack.c.l.s4 1966171168
          %v1900 = vunpack.c.0.s8 %v1899
          %v1901 = vlaneseq
          %v1902 = vshrl.u32 %v1901, 7
          %v1903 = vsub.s32 %v1900, %v1902
          %v1904 = vrot.slane %v1890, %v1903
          %v1905 = vcombine.low %v1897, %v1904
          %v1907 = vunpack.c.l.s4 1966171168
          %v1908 = vunpack.c.0.s8 %v1907
          %v1909 = vlaneseq
          %v1910 = vshrl.u32 %v1909, 7
          %v1911 = vsub.s32 %v1908, %v1910
          %v1912 = vrot.slane %v1905, %v1911
          %v1914 = vadd.f32 %v1609, %v1912
          %v1915 = vxor.u32 %v1914, 2147483648
          %v1916 = vmul.f32 %v1915, 1.442695
          %v1917 = vpow.pop %v1916
          %v1918 = vadd.f32 %v1917, 1.0
          %v1919 = vrcp.pop %v1918
          %v1920 = vmul.f32 1.0, %v1919
          %v1922 = vrot.slane %v1914, 1
          %v1924 = vxor.u32 %v1922, 2147483648
          %v1925 = vmul.f32 %v1924, 1.442695
          %v1926 = vpow.pop %v1925
          %v1927 = vadd.f32 %v1926, 1.0
          %v1928 = vrcp.pop %v1927
          %v1929 = vmul.f32 1.0, %v1928
          %v1930 = vrot.slane %v1914, 2
          %v1932 = vtanh.pop %v1930
          %v1933 = vrot.slane %v1914, 3
          %v1935 = vxor.u32 %v1933, 2147483648
          %v1936 = vmul.f32 %v1935, 1.442695
          %v1937 = vpow.pop %v1936
          %v1938 = vadd.f32 %v1937, 1.0
          %v1939 = vrcp.pop %v1938
          %v1940 = vmul.f32 1.0, %v1939
          %v1941 = vmul.f32 %v1929, %v1598
          %v1942 = vmul.f32 %v1920, %v1932
          %v1943 = vadd.f32 %v1941, %v1942
          %v1944 = vtanh.pop %v1943
          %v1945 = vmul.f32 %v1940, %v1944
          %v1946 = vpack.c.bf16 %v1945, %v1945
          %v1947 = vld [vmem:[#allocation9] sm:$0xff]
          %v1948 = vld [vmem:[#allocation9 + $0x8] sm:$0xff]
          %v1949 = vld [vmem:[#allocation9 + $0x10] sm:$0xff]
          %v1950 = vld [vmem:[#allocation9 + $0x18] sm:$0xff]
          %v1951 = vld [vmem:[#allocation9 + $0x20] sm:$0xff]
          %v1952 = vld [vmem:[#allocation9 + $0x28] sm:$0xff]
          %v1953 = vld [vmem:[#allocation9 + $0x30] sm:$0xff]
          %v1954 = vld [vmem:[#allocation9 + $0x38] sm:$0xff]
          %v1955 = vld [vmem:[#allocation9 + $0x40] sm:$0xff]
          %v1956 = vld [vmem:[#allocation9 + $0x48] sm:$0xff]
          %v1957 = vld [vmem:[#allocation9 + $0x50] sm:$0xff]
          %v1958 = vld [vmem:[#allocation9 + $0x58] sm:$0xff]
          %v1959 = vld [vmem:[#allocation9 + $0x60] sm:$0xff]
          %v1960 = vld [vmem:[#allocation9 + $0x68] sm:$0xff]
          %v1961 = vld [vmem:[#allocation9 + $0x70] sm:$0xff]
          %v1962 = vld [vmem:[#allocation9 + $0x78] sm:$0xff]
          %v1963 = vld [vmem:[#allocation9 + $0x80] sm:$0xff]
          %v1964 = vld [vmem:[#allocation9 + $0x88] sm:$0xff]
          %v1965 = vld [vmem:[#allocation9 + $0x90] sm:$0xff]
          %v1966 = vld [vmem:[#allocation9 + $0x98] sm:$0xff]
          %v1967 = vld [vmem:[#allocation9 + $0xa0] sm:$0xff]
          %v1968 = vld [vmem:[#allocation9 + $0xa8] sm:$0xff]
          %v1969 = vld [vmem:[#allocation9 + $0xb0] sm:$0xff]
          %v1970 = vld [vmem:[#allocation9 + $0xb8] sm:$0xff]
          %v1971 = vld [vmem:[#allocation9 + $0xc0] sm:$0xff]
          %v1972 = vld [vmem:[#allocation9 + $0xc8] sm:$0xff]
          %v1973 = vld [vmem:[#allocation9 + $0xd0] sm:$0xff]
          %v1974 = vld [vmem:[#allocation9 + $0xd8] sm:$0xff]
          %v1975 = vld [vmem:[#allocation9 + $0xe0] sm:$0xff]
          %v1976 = vld [vmem:[#allocation9 + $0xe8] sm:$0xff]
          %v1977 = vld [vmem:[#allocation9 + $0xf0] sm:$0xff]
          %v1978 = vld [vmem:[#allocation9 + $0xf8] sm:$0xff]
          %v1979 = vpack.c.bf16 %v1599, %v1599
          %v1980 = vld [vmem:[#allocation11] sm:$0xff]
          %v1981 = vld [vmem:[#allocation11 + $0x8] sm:$0xff]
          %v1982 = vld [vmem:[#allocation11 + $0x10] sm:$0xff]
          %v1983 = vld [vmem:[#allocation11 + $0x18] sm:$0xff]
          %v1984 = vld [vmem:[#allocation11 + $0x20] sm:$0xff]
          %v1985 = vld [vmem:[#allocation11 + $0x28] sm:$0xff]
          %v1986 = vld [vmem:[#allocation11 + $0x30] sm:$0xff]
          %v1987 = vld [vmem:[#allocation11 + $0x38] sm:$0xff]
          %v1988 = vld [vmem:[#allocation11 + $0x40] sm:$0xff]
          %v1989 = vld [vmem:[#allocation11 + $0x48] sm:$0xff]
          %v1990 = vld [vmem:[#allocation11 + $0x50] sm:$0xff]
          %v1991 = vld [vmem:[#allocation11 + $0x58] sm:$0xff]
          %v1992 = vld [vmem:[#allocation11 + $0x60] sm:$0xff]
          %v1993 = vld [vmem:[#allocation11 + $0x68] sm:$0xff]
          %v1994 = vld [vmem:[#allocation11 + $0x70] sm:$0xff]
          %v1995 = vld [vmem:[#allocation11 + $0x78] sm:$0xff]
          %v1996 = vld [vmem:[#allocation11 + $0x80] sm:$0xff]
          %v1997 = vld [vmem:[#allocation11 + $0x88] sm:$0xff]
          %v1998 = vld [vmem:[#allocation11 + $0x90] sm:$0xff]
          %v1999 = vld [vmem:[#allocation11 + $0x98] sm:$0xff]
          %v2000 = vld [vmem:[#allocation11 + $0xa0] sm:$0xff]
          %v2001 = vld [vmem:[#allocation11 + $0xa8] sm:$0xff]
          %v2002 = vld [vmem:[#allocation11 + $0xb0] sm:$0xff]
          %v2003 = vld [vmem:[#allocation11 + $0xb8] sm:$0xff]
          %v2004 = vld [vmem:[#allocation11 + $0xc0] sm:$0xff]
          %v2005 = vld [vmem:[#allocation11 + $0xc8] sm:$0xff]
          %v2006 = vld [vmem:[#allocation11 + $0xd0] sm:$0xff]
          %v2007 = vld [vmem:[#allocation11 + $0xd8] sm:$0xff]
          %v2008 = vld [vmem:[#allocation11 + $0xe0] sm:$0xff]
          %v2009 = vld [vmem:[#allocation11 + $0xe8] sm:$0xff]
          %v2010 = vld [vmem:[#allocation11 + $0xf0] sm:$0xff]
          %v2011 = vld [vmem:[#allocation11 + $0xf8] sm:$0xff]
          %v2044 = vunpack.c.l.b16 %v1980
          %v2045 = vunpack.c.h.b16 %v1980
          %v2046 = vunpack.c.l.b16 %v1981
          %v2047 = vunpack.c.h.b16 %v1981
          %v2048 = vunpack.c.l.b16 %v1982
          %v2049 = vunpack.c.h.b16 %v1982
          %v2050 = vunpack.c.l.b16 %v1983
          %v2051 = vunpack.c.h.b16 %v1983
          %v2052 = vunpack.c.l.b16 %v1984
          %v2053 = vunpack.c.h.b16 %v1984
          %v2054 = vunpack.c.l.b16 %v1985
          %v2055 = vunpack.c.h.b16 %v1985
          %v2056 = vunpack.c.l.b16 %v1986
          %v2057 = vunpack.c.h.b16 %v1986
          %v2058 = vunpack.c.l.b16 %v1987
          %v2059 = vunpack.c.h.b16 %v1987
          %v2060 = vunpack.c.l.b16 %v1988
          %v2061 = vunpack.c.h.b16 %v1988
          %v2062 = vunpack.c.l.b16 %v1989
          %v2063 = vunpack.c.h.b16 %v1989
          %v2064 = vunpack.c.l.b16 %v1990
          %v2065 = vunpack.c.h.b16 %v1990
          %v2066 = vunpack.c.l.b16 %v1991
          %v2067 = vunpack.c.h.b16 %v1991
          %v2068 = vunpack.c.l.b16 %v1992
          %v2069 = vunpack.c.h.b16 %v1992
          %v2070 = vunpack.c.l.b16 %v1993
          %v2071 = vunpack.c.h.b16 %v1993
          %v2072 = vunpack.c.l.b16 %v1994
          %v2073 = vunpack.c.h.b16 %v1994
          %v2074 = vunpack.c.l.b16 %v1995
          %v2075 = vunpack.c.h.b16 %v1995
          %v2076 = vunpack.c.l.b16 %v1996
          %v2077 = vunpack.c.h.b16 %v1996
          %v2078 = vunpack.c.l.b16 %v1997
          %v2079 = vunpack.c.h.b16 %v1997
          %v2080 = vunpack.c.l.b16 %v1998
          %v2081 = vunpack.c.h.b16 %v1998
          %v2082 = vunpack.c.l.b16 %v1999
          %v2083 = vunpack.c.h.b16 %v1999
          %v2084 = vunpack.c.l.b16 %v2000
          %v2085 = vunpack.c.h.b16 %v2000
          %v2086 = vunpack.c.l.b16 %v2001
          %v2087 = vunpack.c.h.b16 %v2001
          %v2088 = vunpack.c.l.b16 %v2002
          %v2089 = vunpack.c.h.b16 %v2002
          %v2090 = vunpack.c.l.b16 %v2003
          %v2091 = vunpack.c.h.b16 %v2003
          %v2092 = vunpack.c.l.b16 %v2004
          %v2093 = vunpack.c.h.b16 %v2004
          %v2094 = vunpack.c.l.b16 %v2005
          %v2095 = vunpack.c.h.b16 %v2005
          %v2096 = vunpack.c.l.b16 %v2006
          %v2097 = vunpack.c.h.b16 %v2006
          %v2098 = vunpack.c.l.b16 %v2007
          %v2099 = vunpack.c.h.b16 %v2007
          %v2100 = vunpack.c.l.b16 %v2008
          %v2101 = vunpack.c.h.b16 %v2008
          %v2102 = vunpack.c.l.b16 %v2009
          %v2103 = vunpack.c.h.b16 %v2009
          %v2104 = vunpack.c.l.b16 %v2010
          %v2105 = vunpack.c.h.b16 %v2010
          %v2106 = vunpack.c.l.b16 %v2011
          %v2107 = vunpack.c.h.b16 %v2011
          %v2108 = vpack.c.b16 %v2048, %v2044
          %v2109 = vpack.c.b16 %v2049, %v2045
          %v2110 = vpack.c.b16 %v2050, %v2046
          %v2111 = vpack.c.b16 %v2051, %v2047
          %v2112 = vpack.c.b16 %v2056, %v2052
          %v2113 = vpack.c.b16 %v2057, %v2053
          %v2114 = vpack.c.b16 %v2058, %v2054
          %v2115 = vpack.c.b16 %v2059, %v2055
          %v2116 = vpack.c.b16 %v2064, %v2060
          %v2117 = vpack.c.b16 %v2065, %v2061
          %v2118 = vpack.c.b16 %v2066, %v2062
          %v2119 = vpack.c.b16 %v2067, %v2063
          %v2120 = vpack.c.b16 %v2072, %v2068
          %v2121 = vpack.c.b16 %v2073, %v2069
          %v2122 = vpack.c.b16 %v2074, %v2070
          %v2123 = vpack.c.b16 %v2075, %v2071
          %v2124 = vpack.c.b16 %v2080, %v2076
          %v2125 = vpack.c.b16 %v2081, %v2077
          %v2126 = vpack.c.b16 %v2082, %v2078
          %v2127 = vpack.c.b16 %v2083, %v2079
          %v2128 = vpack.c.b16 %v2088, %v2084
          %v2129 = vpack.c.b16 %v2089, %v2085
          %v2130 = vpack.c.b16 %v2090, %v2086
          %v2131 = vpack.c.b16 %v2091, %v2087
          %v2132 = vpack.c.b16 %v2096, %v2092
          %v2133 = vpack.c.b16 %v2097, %v2093
          %v2134 = vpack.c.b16 %v2098, %v2094
          %v2135 = vpack.c.b16 %v2099, %v2095
          %v2136 = vpack.c.b16 %v2104, %v2100
          %v2137 = vpack.c.b16 %v2105, %v2101
          %v2138 = vpack.c.b16 %v2106, %v2102
          %v2139 = vpack.c.b16 %v2107, %v2103
          %2172 = vmatprep.subr.bf16.mxu0 %v2109
          %2173 = vmatpush1.bf16.msra.mxu0 %v2108
          %2174 = vmatprep.subr.bf16.mxu0 %v2113
          %2175 = vmatpush1.bf16.msra.mxu0 %v2112
          %2176 = vmatprep.subr.bf16.mxu0 %v2117
          %2177 = vmatpush1.bf16.msra.mxu0 %v2116
          %2178 = vmatprep.subr.bf16.mxu0 %v2121
          %2179 = vmatpush1.bf16.msra.mxu0 %v2120
          %2180 = vmatprep.subr.bf16.mxu0 %v2125
          %2181 = vmatpush1.bf16.msra.mxu0 %v2124
          %2182 = vmatprep.subr.bf16.mxu0 %v2129
          %2183 = vmatpush1.bf16.msra.mxu0 %v2128
          %2184 = vmatprep.subr.bf16.mxu0 %v2133
          %2185 = vmatpush1.bf16.msra.mxu0 %v2132
          %2186 = vmatprep.subr.bf16.mxu0 %v2137
          %2187 = vmatpush1.bf16.msra.mxu0 %v2136
          %2188 = vmatprep.subr.bf16.mxu0 0
          %2189 = vmatpush1.bf16.msra.mxu0 0
          %2190 = vmatprep.subr.bf16.mxu0 0
          %2191 = vmatpush1.bf16.msra.mxu0 0
          %2192 = vmatprep.subr.bf16.mxu0 0
          %2193 = vmatpush1.bf16.msra.mxu0 0
          %2194 = vmatprep.subr.bf16.mxu0 0
          %2195 = vmatpush1.bf16.msra.mxu0 0
          %2196 = vmatprep.subr.bf16.mxu0 0
          %2197 = vmatpush1.bf16.msra.mxu0 0
          %2198 = vmatprep.subr.bf16.mxu0 0
          %2199 = vmatpush1.bf16.msra.mxu0 0
          %2200 = vmatprep.subr.bf16.mxu0 0
          %2201 = vmatpush1.bf16.msra.mxu0 0
          %2202 = vmatprep.subr.bf16.mxu0 0
          %2203 = vmatpush1.bf16.msra.mxu0 0
          %2204 = vmatprep.mubr.bf16.mxu0 0
          %2205 = vmatmul.mubr.bf16.gmra.mrb[0].mxu0 %v1979
          %v2206 = vpop.f32.mrb[0].mxu0
          %v2207 = vadd.f32 0.0, %v2206
          %v2208 = vpop.f32.mrb[0].mxu0
          %v2209 = vadd.f32 0.0, %v2208
          %v2210 = vpop.f32.mrb[0].mxu0
          %v2211 = vpop.f32.mrb[0].mxu0
          %2212 = vdwg.mxu0
          %2213 = vmatprep.subr.bf16.mxu0 %v2111
          %2214 = vmatpush1.bf16.msra.mxu0 %v2110
          %2215 = vmatprep.subr.bf16.mxu0 %v2115
          %2216 = vmatpush1.bf16.msra.mxu0 %v2114
          %2217 = vmatprep.subr.bf16.mxu0 %v2119
          %2218 = vmatpush1.bf16.msra.mxu0 %v2118
          %2219 = vmatprep.subr.bf16.mxu0 %v2123
          %2220 = vmatpush1.bf16.msra.mxu0 %v2122
          %2221 = vmatprep.subr.bf16.mxu0 %v2127
          %2222 = vmatpush1.bf16.msra.mxu0 %v2126
          %2223 = vmatprep.subr.bf16.mxu0 %v2131
          %2224 = vmatpush1.bf16.msra.mxu0 %v2130
          %2225 = vmatprep.subr.bf16.mxu0 %v2135
          %2226 = vmatpush1.bf16.msra.mxu0 %v2134
          %2227 = vmatprep.subr.bf16.mxu0 %v2139
          %2228 = vmatpush1.bf16.msra.mxu0 %v2138
          %2229 = vmatprep.subr.bf16.mxu0 0
          %2230 = vmatpush1.bf16.msra.mxu0 0
          %2231 = vmatprep.subr.bf16.mxu0 0
          %2232 = vmatpush1.bf16.msra.mxu0 0
          %2233 = vmatprep.subr.bf16.mxu0 0
          %2234 = vmatpush1.bf16.msra.mxu0 0
          %2235 = vmatprep.subr.bf16.mxu0 0
          %2236 = vmatpush1.bf16.msra.mxu0 0
          %2237 = vmatprep.subr.bf16.mxu0 0
          %2238 = vmatpush1.bf16.msra.mxu0 0
          %2239 = vmatprep.subr.bf16.mxu0 0
          %2240 = vmatpush1.bf16.msra.mxu0 0
          %2241 = vmatprep.subr.bf16.mxu0 0
          %2242 = vmatpush1.bf16.msra.mxu0 0
          %2243 = vmatprep.subr.bf16.mxu0 0
          %2244 = vmatpush1.bf16.msra.mxu0 0
          %2245 = vmatprep.mubr.bf16.mxu0 0
          %2246 = vmatmul.mubr.bf16.gmra.mrb[0].mxu0 %v1979
          %v2247 = vpop.f32.mrb[0].mxu0
          %v2248 = vadd.f32 0.0, %v2247
          %v2249 = vpop.f32.mrb[0].mxu0
          %v2250 = vadd.f32 0.0, %v2249
          %v2251 = vpop.f32.mrb[0].mxu0
          %v2252 = vpop.f32.mrb[0].mxu0
          %2253 = vdwg.mxu0
          %v2286 = vunpack.c.l.b16 %v1947
          %v2287 = vunpack.c.h.b16 %v1947
          %v2288 = vunpack.c.l.b16 %v1948
          %v2289 = vunpack.c.h.b16 %v1948
          %v2290 = vunpack.c.l.b16 %v1949
          %v2291 = vunpack.c.h.b16 %v1949
          %v2292 = vunpack.c.l.b16 %v1950
          %v2293 = vunpack.c.h.b16 %v1950
          %v2294 = vunpack.c.l.b16 %v1951
          %v2295 = vunpack.c.h.b16 %v1951
          %v2296 = vunpack.c.l.b16 %v1952
          %v2297 = vunpack.c.h.b16 %v1952
          %v2298 = vunpack.c.l.b16 %v1953
          %v2299 = vunpack.c.h.b16 %v1953
          %v2300 = vunpack.c.l.b16 %v1954
          %v2301 = vunpack.c.h.b16 %v1954
          %v2302 = vunpack.c.l.b16 %v1955
          %v2303 = vunpack.c.h.b16 %v1955
          %v2304 = vunpack.c.l.b16 %v1956
          %v2305 = vunpack.c.h.b16 %v1956
          %v2306 = vunpack.c.l.b16 %v1957
          %v2307 = vunpack.c.h.b16 %v1957
          %v2308 = vunpack.c.l.b16 %v1958
          %v2309 = vunpack.c.h.b16 %v1958
          %v2310 = vunpack.c.l.b16 %v1959
          %v2311 = vunpack.c.h.b16 %v1959
          %v2312 = vunpack.c.l.b16 %v1960
          %v2313 = vunpack.c.h.b16 %v1960
          %v2314 = vunpack.c.l.b16 %v1961
          %v2315 = vunpack.c.h.b16 %v1961
          %v2316 = vunpack.c.l.b16 %v1962
          %v2317 = vunpack.c.h.b16 %v1962
          %v2318 = vunpack.c.l.b16 %v1963
          %v2319 = vunpack.c.h.b16 %v1963
          %v2320 = vunpack.c.l.b16 %v1964
          %v2321 = vunpack.c.h.b16 %v1964
          %v2322 = vunpack.c.l.b16 %v1965
          %v2323 = vunpack.c.h.b16 %v1965
          %v2324 = vunpack.c.l.b16 %v1966
          %v2325 = vunpack.c.h.b16 %v1966
          %v2326 = vunpack.c.l.b16 %v1967
          %v2327 = vunpack.c.h.b16 %v1967
          %v2328 = vunpack.c.l.b16 %v1968
          %v2329 = vunpack.c.h.b16 %v1968
          %v2330 = vunpack.c.l.b16 %v1969
          %v2331 = vunpack.c.h.b16 %v1969
          %v2332 = vunpack.c.l.b16 %v1970
          %v2333 = vunpack.c.h.b16 %v1970
          %v2334 = vunpack.c.l.b16 %v1971
          %v2335 = vunpack.c.h.b16 %v1971
          %v2336 = vunpack.c.l.b16 %v1972
          %v2337 = vunpack.c.h.b16 %v1972
          %v2338 = vunpack.c.l.b16 %v1973
          %v2339 = vunpack.c.h.b16 %v1973
          %v2340 = vunpack.c.l.b16 %v1974
          %v2341 = vunpack.c.h.b16 %v1974
          %v2342 = vunpack.c.l.b16 %v1975
          %v2343 = vunpack.c.h.b16 %v1975
          %v2344 = vunpack.c.l.b16 %v1976
          %v2345 = vunpack.c.h.b16 %v1976
          %v2346 = vunpack.c.l.b16 %v1977
          %v2347 = vunpack.c.h.b16 %v1977
          %v2348 = vunpack.c.l.b16 %v1978
          %v2349 = vunpack.c.h.b16 %v1978
          %v2350 = vpack.c.b16 %v2290, %v2286
          %v2351 = vpack.c.b16 %v2291, %v2287
          %v2352 = vpack.c.b16 %v2292, %v2288
          %v2353 = vpack.c.b16 %v2293, %v2289
          %v2354 = vpack.c.b16 %v2298, %v2294
          %v2355 = vpack.c.b16 %v2299, %v2295
          %v2356 = vpack.c.b16 %v2300, %v2296
          %v2357 = vpack.c.b16 %v2301, %v2297
          %v2358 = vpack.c.b16 %v2306, %v2302
          %v2359 = vpack.c.b16 %v2307, %v2303
          %v2360 = vpack.c.b16 %v2308, %v2304
          %v2361 = vpack.c.b16 %v2309, %v2305
          %v2362 = vpack.c.b16 %v2314, %v2310
          %v2363 = vpack.c.b16 %v2315, %v2311
          %v2364 = vpack.c.b16 %v2316, %v2312
          %v2365 = vpack.c.b16 %v2317, %v2313
          %v2366 = vpack.c.b16 %v2322, %v2318
          %v2367 = vpack.c.b16 %v2323, %v2319
          %v2368 = vpack.c.b16 %v2324, %v2320
          %v2369 = vpack.c.b16 %v2325, %v2321
          %v2370 = vpack.c.b16 %v2330, %v2326
          %v2371 = vpack.c.b16 %v2331, %v2327
          %v2372 = vpack.c.b16 %v2332, %v2328
          %v2373 = vpack.c.b16 %v2333, %v2329
          %v2374 = vpack.c.b16 %v2338, %v2334
          %v2375 = vpack.c.b16 %v2339, %v2335
          %v2376 = vpack.c.b16 %v2340, %v2336
          %v2377 = vpack.c.b16 %v2341, %v2337
          %v2378 = vpack.c.b16 %v2346, %v2342
          %v2379 = vpack.c.b16 %v2347, %v2343
          %v2380 = vpack.c.b16 %v2348, %v2344
          %v2381 = vpack.c.b16 %v2349, %v2345
          %2414 = vmatprep.subr.bf16.mxu0 %v2351
          %2415 = vmatpush1.bf16.msra.mxu0 %v2350
          %2416 = vmatprep.subr.bf16.mxu0 %v2355
          %2417 = vmatpush1.bf16.msra.mxu0 %v2354
          %2418 = vmatprep.subr.bf16.mxu0 %v2359
          %2419 = vmatpush1.bf16.msra.mxu0 %v2358
          %2420 = vmatprep.subr.bf16.mxu0 %v2363
          %2421 = vmatpush1.bf16.msra.mxu0 %v2362
          %2422 = vmatprep.subr.bf16.mxu0 %v2367
          %2423 = vmatpush1.bf16.msra.mxu0 %v2366
          %2424 = vmatprep.subr.bf16.mxu0 %v2371
          %2425 = vmatpush1.bf16.msra.mxu0 %v2370
          %2426 = vmatprep.subr.bf16.mxu0 %v2375
          %2427 = vmatpush1.bf16.msra.mxu0 %v2374
          %2428 = vmatprep.subr.bf16.mxu0 %v2379
          %2429 = vmatpush1.bf16.msra.mxu0 %v2378
          %2430 = vmatprep.subr.bf16.mxu0 0
          %2431 = vmatpush1.bf16.msra.mxu0 0
          %2432 = vmatprep.subr.bf16.mxu0 0
          %2433 = vmatpush1.bf16.msra.mxu0 0
          %2434 = vmatprep.subr.bf16.mxu0 0
          %2435 = vmatpush1.bf16.msra.mxu0 0
          %2436 = vmatprep.subr.bf16.mxu0 0
          %2437 = vmatpush1.bf16.msra.mxu0 0
          %2438 = vmatprep.subr.bf16.mxu0 0
          %2439 = vmatpush1.bf16.msra.mxu0 0
          %2440 = vmatprep.subr.bf16.mxu0 0
          %2441 = vmatpush1.bf16.msra.mxu0 0
          %2442 = vmatprep.subr.bf16.mxu0 0
          %2443 = vmatpush1.bf16.msra.mxu0 0
          %2444 = vmatprep.subr.bf16.mxu0 0
          %2445 = vmatpush1.bf16.msra.mxu0 0
          %2446 = vmatprep.mubr.bf16.mxu0 0
          %2447 = vmatmul.mubr.bf16.gmra.mrb[0].mxu0 %v1946
          %v2448 = vpop.f32.mrb[0].mxu0
          %v2449 = vadd.f32 %v2207, %v2448
          %v2450 = vpop.f32.mrb[0].mxu0
          %v2451 = vadd.f32 %v2209, %v2450
          %v2452 = vpop.f32.mrb[0].mxu0
          %v2453 = vpop.f32.mrb[0].mxu0
          %2454 = vdwg.mxu0
          %2455 = vmatprep.subr.bf16.mxu0 %v2353
          %2456 = vmatpush1.bf16.msra.mxu0 %v2352
          %2457 = vmatprep.subr.bf16.mxu0 %v2357
          %2458 = vmatpush1.bf16.msra.mxu0 %v2356
          %2459 = vmatprep.subr.bf16.mxu0 %v2361
          %2460 = vmatpush1.bf16.msra.mxu0 %v2360
          %2461 = vmatprep.subr.bf16.mxu0 %v2365
          %2462 = vmatpush1.bf16.msra.mxu0 %v2364
          %2463 = vmatprep.subr.bf16.mxu0 %v2369
          %2464 = vmatpush1.bf16.msra.mxu0 %v2368
          %2465 = vmatprep.subr.bf16.mxu0 %v2373
          %2466 = vmatpush1.bf16.msra.mxu0 %v2372
          %2467 = vmatprep.subr.bf16.mxu0 %v2377
          %2468 = vmatpush1.bf16.msra.mxu0 %v2376
          %2469 = vmatprep.subr.bf16.mxu0 %v2381
          %2470 = vmatpush1.bf16.msra.mxu0 %v2380
          %2471 = vmatprep.subr.bf16.mxu0 0
          %2472 = vmatpush1.bf16.msra.mxu0 0
          %2473 = vmatprep.subr.bf16.mxu0 0
          %2474 = vmatpush1.bf16.msra.mxu0 0
          %2475 = vmatprep.subr.bf16.mxu0 0
          %2476 = vmatpush1.bf16.msra.mxu0 0
          %2477 = vmatprep.subr.bf16.mxu0 0
          %2478 = vmatpush1.bf16.msra.mxu0 0
          %2479 = vmatprep.subr.bf16.mxu0 0
          %2480 = vmatpush1.bf16.msra.mxu0 0
          %2481 = vmatprep.subr.bf16.mxu0 0
          %2482 = vmatpush1.bf16.msra.mxu0 0
          %2483 = vmatprep.subr.bf16.mxu0 0
          %2484 = vmatpush1.bf16.msra.mxu0 0
          %2485 = vmatprep.subr.bf16.mxu0 0
          %2486 = vmatpush1.bf16.msra.mxu0 0
          %2487 = vmatprep.mubr.bf16.mxu0 0
          %2488 = vmatmul.mubr.bf16.gmra.mrb[0].mxu0 %v1946
          %v2489 = vpop.f32.mrb[0].mxu0
          %v2490 = vadd.f32 %v2248, %v2489
          %v2491 = vpop.f32.mrb[0].mxu0
          %v2492 = vadd.f32 %v2250, %v2491
          %v2493 = vpop.f32.mrb[0].mxu0
          %v2494 = vpop.f32.mrb[0].mxu0
          %2495 = vdwg.mxu0
          %v2496 = vld [vmem:[%s14] sm:$0xf]
          %v2498 = vlaneseq
          %v2499 = vshrl.u32 %v2498, 7
          %v2500 = vsub.s32 0, %v2499
          %v2501 = vrot.slane %v2496, %v2500
          %v2502 = vlaneseq
          %v2503 = vshrl.u32 %v2502, 7
          %v2504 = vsub.s32 1, %v2503
          %v2505 = vrot.slane %v2496, %v2504
          %v2506 = vlaneseq
          %v2507 = vshrl.u32 %v2506, 7
          %v2508 = vsub.s32 2, %v2507
          %v2509 = vrot.slane %v2496, %v2508
          %v2510 = vlaneseq
          %v2511 = vshrl.u32 %v2510, 7
          %v2512 = vsub.s32 3, %v2511
          %v2513 = vrot.slane %v2496, %v2512
          %v2518 = vadd.f32 %v2449, %v2501
          %v2519 = vadd.f32 %v2451, %v2505
          %v2520 = vadd.f32 %v2490, %v2509
          %v2521 = vadd.f32 %v2492, %v2513
          %v2522 = vxor.u32 %v2518, 2147483648
          %v2523 = vmul.f32 %v2522, 1.442695
          %v2524 = vpow.pop %v2523
          %v2525 = vadd.f32 %v2524, 1.0
          %v2526 = vrcp.pop %v2525
          %v2527 = vmul.f32 1.0, %v2526
          %v2528 = vxor.u32 %v2519, 2147483648
          %v2529 = vmul.f32 %v2528, 1.442695
          %v2530 = vpow.pop %v2529
          %v2531 = vadd.f32 %v2530, 1.0
          %v2532 = vrcp.pop %v2531
          %v2533 = vmul.f32 1.0, %v2532
          %v2534 = vtanh.pop %v2520
          %v2535 = vxor.u32 %v2521, 2147483648
          %v2536 = vmul.f32 %v2535, 1.442695
          %v2537 = vpow.pop %v2536
          %v2538 = vadd.f32 %v2537, 1.0
          %v2539 = vrcp.pop %v2538
          %v2540 = vmul.f32 1.0, %v2539
          %v2541 = vmul.f32 %v2533, %v1600
          %v2542 = vmul.f32 %v2527, %v2534
          %v2543 = vadd.f32 %v2541, %v2542
          %v2544 = vtanh.pop %v2543
          %v2545 = vmul.f32 %v2540, %v2544
        $region129: #{cnn_lstm_hybrid_forward.1} parent=103 // loop_footer
          %s1596 = sadd.s32 1, %s1592
        $region130: #{cnn_lstm_hybrid_forward.1} parent=103 // loop_footer_branch
          %1591 = sbr.rel target = $region126
        $region131: #{cnn_lstm_hybrid_forward.1} parent=103 // loop_exit
          _
        %v2546 = vpack.c.bf16 %v1599, %v1599
        %v2547 = vld [vmem:[%s15] sm:$0xf]
        %v2548 = vld [vmem:[%s15 + $0x4] sm:$0xf]
        %v2549 = vld [vmem:[%s15 + $0x8] sm:$0xf]
        %v2550 = vld [vmem:[%s15 + $0xc] sm:$0xf]
        %v2551 = vld [vmem:[%s15 + $0x10] sm:$0xf]
        %v2552 = vld [vmem:[%s15 + $0x14] sm:$0xf]
        %v2553 = vld [vmem:[%s15 + $0x18] sm:$0xf]
        %v2554 = vld [vmem:[%s15 + $0x1c] sm:$0xf]
        %v2555 = vld [vmem:[%s15 + $0x20] sm:$0xf]
        %v2556 = vld [vmem:[%s15 + $0x24] sm:$0xf]
        %v2557 = vld [vmem:[%s15 + $0x28] sm:$0xf]
        %v2558 = vld [vmem:[%s15 + $0x2c] sm:$0xf]
        %v2559 = vld [vmem:[%s15 + $0x30] sm:$0xf]
        %v2560 = vld [vmem:[%s15 + $0x34] sm:$0xf]
        %v2561 = vld [vmem:[%s15 + $0x38] sm:$0xf]
        %v2562 = vld [vmem:[%s15 + $0x3c] sm:$0xf]
        %v2563 = vld [vmem:[%s16] sm:$0x1]
        %v2580 = vunpack.c.l.b16 %v2547
        %v2581 = vunpack.c.l.b16 %v2548
        %v2582 = vunpack.c.l.b16 %v2549
        %v2583 = vunpack.c.l.b16 %v2550
        %v2584 = vunpack.c.l.b16 %v2551
        %v2585 = vunpack.c.l.b16 %v2552
        %v2586 = vunpack.c.l.b16 %v2553
        %v2587 = vunpack.c.l.b16 %v2554
        %v2588 = vunpack.c.l.b16 %v2555
        %v2589 = vunpack.c.l.b16 %v2556
        %v2590 = vunpack.c.l.b16 %v2557
        %v2591 = vunpack.c.l.b16 %v2558
        %v2592 = vunpack.c.l.b16 %v2559
        %v2593 = vunpack.c.l.b16 %v2560
        %v2594 = vunpack.c.l.b16 %v2561
        %v2595 = vunpack.c.l.b16 %v2562
        %v2596 = vpack.c.b16 %v2581, %v2580
        %v2597 = vpack.c.b16 %v2583, %v2582
        %v2598 = vpack.c.b16 %v2585, %v2584
        %v2599 = vpack.c.b16 %v2587, %v2586
        %v2600 = vpack.c.b16 %v2589, %v2588
        %v2601 = vpack.c.b16 %v2591, %v2590
        %v2602 = vpack.c.b16 %v2593, %v2592
        %v2603 = vpack.c.b16 %v2595, %v2594
        %2612 = vmatprep.subr.bf16.mxu0 0
        %2613 = vmatpush1.bf16.msra.mxu0 %v2596
        %2614 = vmatprep.subr.bf16.mxu0 0
        %2615 = vmatpush1.bf16.msra.mxu0 %v2597
        %2616 = vmatprep.subr.bf16.mxu0 0
        %2617 = vmatpush1.bf16.msra.mxu0 %v2598
        %2618 = vmatprep.subr.bf16.mxu0 0
        %2619 = vmatpush1.bf16.msra.mxu0 %v2599
        %2620 = vmatprep.subr.bf16.mxu0 0
        %2621 = vmatpush1.bf16.msra.mxu0 %v2600
        %2622 = vmatprep.subr.bf16.mxu0 0
        %2623 = vmatpush1.bf16.msra.mxu0 %v2601
        %2624 = vmatprep.subr.bf16.mxu0 0
        %2625 = vmatpush1.bf16.msra.mxu0 %v2602
        %2626 = vmatprep.subr.bf16.mxu0 0
        %2627 = vmatpush1.bf16.msra.mxu0 %v2603
        %2628 = vmatprep.subr.bf16.mxu0 0
        %2629 = vmatpush1.bf16.msra.mxu0 0
        %2630 = vmatprep.subr.bf16.mxu0 0
        %2631 = vmatpush1.bf16.msra.mxu0 0
        %2632 = vmatprep.subr.bf16.mxu0 0
        %2633 = vmatpush1.bf16.msra.mxu0 0
        %2634 = vmatprep.subr.bf16.mxu0 0
        %2635 = vmatpush1.bf16.msra.mxu0 0
        %2636 = vmatprep.subr.bf16.mxu0 0
        %2637 = vmatpush1.bf16.msra.mxu0 0
        %2638 = vmatprep.subr.bf16.mxu0 0
        %2639 = vmatpush1.bf16.msra.mxu0 0
        %2640 = vmatprep.subr.bf16.mxu0 0
        %2641 = vmatpush1.bf16.msra.mxu0 0
        %2642 = vmatprep.subr.bf16.mxu0 0
        %2643 = vmatpush1.bf16.msra.mxu0 0
        %2644 = vmatprep.mubr.bf16.mxu0 0
        %2645 = vmatmul.mubr.bf16.gmra.mrb[0].mxu0 %v2546
        %v2646 = vpop.f32.mrb[0].mxu0
        %v2647 = vadd.f32 %v2563, %v2646
        %v2648 = vpop.f32.mrb[0].mxu0
        %v2649 = vpop.f32.mrb[0].mxu0
        %v2650 = vpop.f32.mrb[0].mxu0
        %2651 = vdwg.mxu0
        %v2652 = vpack.c.bf16 %v2647, %v2647
        %v2653 = vld [vmem:[%s17] sm:$0xf]
        %v2654 = vld [vmem:[%s17 + $0x4] sm:$0xf]
        %v2655 = vld [vmem:[%s17 + $0x8] sm:$0xf]
        %v2656 = vld [vmem:[%s17 + $0xc] sm:$0xf]
        %v2657 = vld [vmem:[%s17 + $0x10] sm:$0xf]
        %v2658 = vld [vmem:[%s17 + $0x14] sm:$0xf]
        %v2659 = vld [vmem:[%s17 + $0x18] sm:$0xf]
        %v2660 = vld [vmem:[%s17 + $0x1c] sm:$0xf]
        %v2661 = vld [vmem:[%s18] sm:$0x1]
        %v2670 = vunpack.c.l.b16 %v2653
        %v2671 = vunpack.c.l.b16 %v2654
        %v2672 = vunpack.c.l.b16 %v2655
        %v2673 = vunpack.c.l.b16 %v2656
        %v2674 = vunpack.c.l.b16 %v2657
        %v2675 = vunpack.c.l.b16 %v2658
        %v2676 = vunpack.c.l.b16 %v2659
        %v2677 = vunpack.c.l.b16 %v2660
        %v2678 = vpack.c.b16 %v2671, %v2670
        %v2679 = vpack.c.b16 %v2673, %v2672
        %v2680 = vpack.c.b16 %v2675, %v2674
        %v2681 = vpack.c.b16 %v2677, %v2676
        %v2687 = vsel %vm819, %v2652, 0
        %2689 = vmatprep.subr.bf16.mxu0 0
        %2690 = vmatpush1.bf16.msra.mxu0 %v2678
        %2691 = vmatprep.subr.bf16.mxu0 0
        %2692 = vmatpush1.bf16.msra.mxu0 %v2679
        %2693 = vmatprep.subr.bf16.mxu0 0
        %2694 = vmatpush1.bf16.msra.mxu0 %v2680
        %2695 = vmatprep.subr.bf16.mxu0 0
        %2696 = vmatpush1.bf16.msra.mxu0 %v2681
        %2697 = vmatprep.subr.bf16.mxu0 0
        %2698 = vmatpush1.bf16.msra.mxu0 0
        %2699 = vmatprep.subr.bf16.mxu0 0
        %2700 = vmatpush1.bf16.msra.mxu0 0
        %2701 = vmatprep.subr.bf16.mxu0 0
        %2702 = vmatpush1.bf16.msra.mxu0 0
        %2703 = vmatprep.subr.bf16.mxu0 0
        %2704 = vmatpush1.bf16.msra.mxu0 0
        %2705 = vmatprep.subr.bf16.mxu0 0
        %2706 = vmatpush1.bf16.msra.mxu0 0
        %2707 = vmatprep.subr.bf16.mxu0 0
        %2708 = vmatpush1.bf16.msra.mxu0 0
        %2709 = vmatprep.subr.bf16.mxu0 0
        %2710 = vmatpush1.bf16.msra.mxu0 0
        %2711 = vmatprep.subr.bf16.mxu0 0
        %2712 = vmatpush1.bf16.msra.mxu0 0
        %2713 = vmatprep.subr.bf16.mxu0 0
        %2714 = vmatpush1.bf16.msra.mxu0 0
        %2715 = vmatprep.subr.bf16.mxu0 0
        %2716 = vmatpush1.bf16.msra.mxu0 0
        %2717 = vmatprep.subr.bf16.mxu0 0
        %2718 = vmatpush1.bf16.msra.mxu0 0
        %2719 = vmatprep.subr.bf16.mxu0 0
        %2720 = vmatpush1.bf16.msra.mxu0 0
        %2721 = vmatprep.mubr.bf16.mxu0 0
        %2722 = vmatmul.mubr.bf16.gmra.mrb[0].mxu0 %v2687
        %v2723 = vpop.f32.mrb[0].mxu0
        %v2724 = vadd.f32 %v2661, %v2723
        %v2725 = vpop.f32.mrb[0].mxu0
        %v2726 = vpop.f32.mrb[0].mxu0
        %v2727 = vpop.f32.mrb[0].mxu0
        %2728 = vdwg.mxu0
        %v2729 = vpack.c.bf16 %v2724, %v2724
        %v2730 = vld [vmem:[%s19] sm:$0xf]
        %v2731 = vld [vmem:[%s19 + $0x4] sm:$0xf]
        %v2732 = vld [vmem:[%s19 + $0x8] sm:$0xf]
        %v2733 = vld [vmem:[%s19 + $0xc] sm:$0xf]
        %v2734 = vld [vmem:[#allocation3] sm:$0x1]
        %v2739 = vunpack.c.l.b16 %v2730
        %v2740 = vunpack.c.l.b16 %v2731
        %v2741 = vunpack.c.l.b16 %v2732
        %v2742 = vunpack.c.l.b16 %v2733
        %v2743 = vpack.c.b16 %v2740, %v2739
        %v2744 = vpack.c.b16 %v2742, %v2741
        %vm2747 = vcmask 261120
        %v2749 = vsel %vm2747, %v2729, 0
        %2751 = vmatprep.subr.bf16.mxu0 0
        %2752 = vmatpush1.bf16.msra.mxu0 %v2743
        %2753 = vmatprep.subr.bf16.mxu0 0
        %2754 = vmatpush1.bf16.msra.mxu0 %v2744
        %2755 = vmatprep.subr.bf16.mxu0 0
        %2756 = vmatpush1.bf16.msra.mxu0 0
        %2757 = vmatprep.subr.bf16.mxu0 0
        %2758 = vmatpush1.bf16.msra.mxu0 0
        %2759 = vmatprep.subr.bf16.mxu0 0
        %2760 = vmatpush1.bf16.msra.mxu0 0
        %2761 = vmatprep.subr.bf16.mxu0 0
        %2762 = vmatpush1.bf16.msra.mxu0 0
        %2763 = vmatprep.subr.bf16.mxu0 0
        %2764 = vmatpush1.bf16.msra.mxu0 0
        %2765 = vmatprep.subr.bf16.mxu0 0
        %2766 = vmatpush1.bf16.msra.mxu0 0
        %2767 = vmatprep.subr.bf16.mxu0 0
        %2768 = vmatpush1.bf16.msra.mxu0 0
        %2769 = vmatprep.subr.bf16.mxu0 0
        %2770 = vmatpush1.bf16.msra.mxu0 0
        %2771 = vmatprep.subr.bf16.mxu0 0
        %2772 = vmatpush1.bf16.msra.mxu0 0
        %2773 = vmatprep.subr.bf16.mxu0 0
        %2774 = vmatpush1.bf16.msra.mxu0 0
        %2775 = vmatprep.subr.bf16.mxu0 0
        %2776 = vmatpush1.bf16.msra.mxu0 0
        %2777 = vmatprep.subr.bf16.mxu0 0
        %2778 = vmatpush1.bf16.msra.mxu0 0
        %2779 = vmatprep.subr.bf16.mxu0 0
        %2780 = vmatpush1.bf16.msra.mxu0 0
        %2781 = vmatprep.subr.bf16.mxu0 0
        %2782 = vmatpush1.bf16.msra.mxu0 0
        %2783 = vmatprep.mubr.bf16.mxu0 0
        %2784 = vmatmul.mubr.bf16.gmra.mrb[0].mxu0 %v2749
        %v2785 = vpop.f32.mrb[0].mxu0
        %v2786 = vadd.f32 %v2734, %v2785
        %v2787 = vpop.f32.mrb[0].mxu0
        %v2788 = vpop.f32.mrb[0].mxu0
        %v2789 = vpop.f32.mrb[0].mxu0
        %2790 = vdwg.mxu0
        %v2791 = vxor.u32 %v2786, 2147483648
        %v2792 = vmul.f32 %v2791, 1.442695
        %v2793 = vpow.pop %v2792
        %v2794 = vadd.f32 %v2793, 1.0
        %v2795 = vrcp.pop %v2794
        %v2796 = vmul.f32 1.0, %v2795
        %vm2797 = vcmask 0
        %2798 = vst.msk [vmem:[%s722] sm:$0x1] %vm2797, %v2796
        %p2799 = scmp.lt.s32.totalorder %s37, 1
        %s2800 = scalar_select %p2799, %s37, 1
        %s2801 = scalar_lea.vmem %s21, %s2800
        // Predicated region
        $region132: #{cnn_lstm_hybrid_forward.1} parent=103 // pred_check
          %p2802 = pneg %p501
        $region133: #{cnn_lstm_hybrid_forward.1} parent=103 // pred_check_branch
          %2804 = sbr.rel (%p2802) target = $region135
        $region134: #{cnn_lstm_hybrid_forward.1} parent=103 // pred_region
          _
        $region135: #{cnn_lstm_hybrid_forward.1} parent=103 // pred_fallthru
          _
      $region104: #{cnn_lstm_hybrid_forward.1} parent=5 // pred_fallthru
        _
      %p2805 = scmp.le.s32.totalorder 2, %s32
      // Predicated region
      $region136: #{cnn_lstm_hybrid_forward.1} parent=5 // pred_check
        %p2806 = pneg %p2805
      $region137: #{cnn_lstm_hybrid_forward.1} parent=5 // pred_check_branch
        %2808 = sbr.rel (%p2806) target = $region139
      $region138: #{cnn_lstm_hybrid_forward.1} parent=5 // pred_region
        %s2809 = ssub.s32 %s32, 2
        // Predicated region
        $region140: #{cnn_lstm_hybrid_forward.1} parent=138 // pred_check
          %p2810 = pneg %p507
        $region141: #{cnn_lstm_hybrid_forward.1} parent=138 // pred_check_branch
          %2812 = sbr.rel (%p2810) target = $region143
        $region142: #{cnn_lstm_hybrid_forward.1} parent=138 // pred_region
          %p2813 = scmp.lt.s32.totalorder %s38, 1
          %s2814 = scalar_select %p2813, %s38, 1
          %s2815 = scalar_lea.vmem %s21, %s2814
        $region143: #{cnn_lstm_hybrid_forward.1} parent=138 // pred_fallthru
          _
      $region139: #{cnn_lstm_hybrid_forward.1} parent=5 // pred_fallthru
        _
    $region6: #{cnn_lstm_hybrid_forward.1} parent=1 // loop_footer
      %s36 = sadd.s32 1, %s32
    $region7: #{cnn_lstm_hybrid_forward.1} parent=1 // loop_footer_branch
      %31 = sbr.rel target = $region3
    $region8: #{cnn_lstm_hybrid_forward.1} parent=1 // loop_exit
      _
    %2816 = vsyncpa [#allocation5], 1
    %s2817 = scalar_lea.sflag [#allocation5], 1
    %2818 = vsyncpa %s2817, 1
    %2819 = vsyncpa [#allocation7], 1
    %2820 = vsyncpa [#allocation10], 1

</llo_original>
